<compile_context>
chip_gen: v6e
topology: v6e:2x2x1
jax: 0.10.0
libtpu: 0.0.40
codegen_flags: <defaults>
</compile_context>

<pallas_src>
import functools

import numpy as np
import jax
import jax.numpy as jnp
from jax.experimental import pallas as pl
from jax.experimental.pallas import tpu as pltpu

_FS = 5
# scipy.signal.gaussian(5, std=1.0): exp(-0.5*n^2), n = -2..2 (NOT normalized,
# exactly as in the PyTorch module).
_GAUSS = tuple(float(np.exp(-0.5 * ((k - (_FS - 1) / 2.0) ** 2))) for k in range(_FS))
# (dy, dx) position of the "-1" tap of the 8 directional filters (0..315 deg):
#   dir_k[i, j] = grad_mag[i, j] - grad_mag[i + dy, j + dx]   (zero padded)
_DIR_OFFS = ((0, 1), (1, 1), (1, 0), (1, -1), (0, -1), (-1, -1), (-1, 0), (-1, 1))
_HALO = 4            # 2 (Gaussian) + 1 (Sobel) + 1 (directional/NMS) rows per side

# Orientation-bin boundaries implied by the module's
#   round((atan2(gy, gx) * 180 / 3.14159 + 180) / 45):
# the bin flips at |angle| = 0.5*(3.14159/4) and 1.5*(3.14159/4) off the axes.
_PI_REF = 3.14159
_TAN_LO = float(np.tan(0.5 * (_PI_REF / 4.0)))   # ~= tan(22.5 deg)
_TAN_HI = float(np.tan(1.5 * (_PI_REF / 4.0)))   # ~= tan(67.5 deg)


def _roll(x, dy, dx):
    """out[i, j] = x[(i + dy) % R, (j + dx) % C].  No masking: callers ensure
    wrap-around only ever lands in (or comes from) halo/pad that is either zero
    or discarded before it can reach an interior output row."""
    R, C = x.shape
    out = x
    if dy:
        out = pltpu.roll(out, shift=(-dy) % R, axis=0)
    if dx:
        out = pltpu.roll(out, shift=(-dx) % C, axis=1)
    return out


def _canny_kernel(H, W, T, thr_ref, img_hbm,
                  blur_ref, mag_ref, ori_ref, thin_ref, thresh_ref, early_ref,
                  inbuf, in_sem):
    i = pl.program_id(0)
    _, Tb, Wp = inbuf.shape            # Tb = T + 2 * _HALO
    threshold = thr_ref[0]

    # ---- fetch this band's 3 channels (with 4 halo rows each side) from HBM -
    start = pl.multiple_of(i * T, 8)
    cp = pltpu.make_async_copy(img_hbm.at[:, pl.ds(start, Tb), :], inbuf, in_sem)
    cp.start()
    cp.wait()
    # TODO(synk): double-buffer this input fetch across grid steps; it is kept
    # synchronous so the band axis can stay "parallel" (v7x megacore) with no
    # cross-iteration DMA state.  Output traffic is still pipelined by BlockSpec.

    x = inbuf[...].reshape(3 * Tb, Wp)     # channels stacked along sublanes

    # ---- validity masks from 1-D iotas (global image coords of this band) ---
    grow = jax.lax.broadcasted_iota(jnp.int32, (Tb, 1), 0) + (i * T - _HALO)
    row_ok = (grow >= 0) & (grow < H)                               # (Tb, 1)
    col_ok = jax.lax.broadcasted_iota(jnp.int32, (1, Wp), 1) < W    # (1, Wp)
    row_ok3 = jnp.concatenate([row_ok, row_ok, row_ok], axis=0)     # (3*Tb, 1)

    # ---- separable Gaussian blur (horizontal then vertical, like torch) -----
    bh = _GAUSS[2] * x
    for k in (0, 1, 3, 4):
        bh = bh + _GAUSS[k] * _roll(x, 0, k - 2)
    blur = _GAUSS[2] * bh
    for k in (0, 1, 3, 4):
        blur = blur + _GAUSS[k] * _roll(bh, k - 2, 0)
    # Re-impose the reference conv2d zero padding before the next stencil:
    # zero the pad columns and any rows outside the real image.
    blur = jnp.where(row_ok3 & col_ok, blur, 0.0)
    for c in range(3):
        blur_ref[c] = blur[c * Tb + _HALO: c * Tb + _HALO + T]

    # ---- separable Sobel (same taps as the 3x3 reference filters) -----------
    th = _roll(blur, 0, -1) - _roll(blur, 0, 1)
    gx = _roll(th, -1, 0) + 2.0 * th + _roll(th, 1, 0)
    uv = _roll(blur, -1, 0) - _roll(blur, 1, 0)
    gy = _roll(uv, 0, -1) + 2.0 * uv + _roll(uv, 0, 1)

    mag_c = jnp.sqrt(gx * gx + gy * gy)                  # per-channel magnitude
    grad_mag = mag_c[0:Tb] + mag_c[Tb:2 * Tb] + mag_c[2 * Tb:3 * Tb]
    sum_gx = gx[0:Tb] + gx[Tb:2 * Tb] + gx[2 * Tb:3 * Tb]
    sum_gy = gy[0:Tb] + gy[Tb:2 * Tb] + gy[2 * Tb:3 * Tb]
    grad_mag = jnp.where(row_ok & col_ok, grad_mag, 0.0)   # re-zero pad region

    # ---- orientation: octant classification (replaces atan2 + round + mod) --
    # bin = round((atan2(sum_gy, sum_gx) * 180/3.14159 + 180) / 45) in 0..8.
    axv = jnp.abs(sum_gx)
    ayv = jnp.abs(sum_gy)
    shallow = ayv <= _TAN_LO * axv       # within ~22.5 deg of the x axis
    steep = ayv >= _TAN_HI * axv         # within ~22.5 deg of the y axis
    gxp = sum_gx >= 0.0
    gyp = sum_gy >= 0.0
    bin_i = jnp.where(
        shallow,
        jnp.where(gxp, 4, jnp.where(gyp, 8, 0)),        # east / west(+) / west(-)
        jnp.where(steep,
                  jnp.where(gyp, 6, 2),                 # north / south
                  jnp.where(gyp, jnp.where(gxp, 5, 7),
                            jnp.where(gxp, 3, 1))))     # the four diagonals
    ori = 45.0 * bin_i.astype(jnp.float32)              # {0, 45, ..., 360}
    idx_pos = bin_i & 7                                  # bin 8 (=360) -> filter 0

    # ---- directional filter bank: 2 horizontal + 6 vertical rolls ------------
    gm_xp = _roll(grad_mag, 0, 1)        # grad_mag[i, j+1]
    gm_xm = _roll(grad_mag, 0, -1)       # grad_mag[i, j-1]
    shifted = [None] * 8
    shifted[0] = gm_xp
    shifted[4] = gm_xm
    shifted[2] = _roll(grad_mag, 1, 0)
    shifted[6] = _roll(grad_mag, -1, 0)
    shifted[1] = _roll(gm_xp, 1, 0)      # grad_mag[i+1, j+1]
    shifted[7] = _roll(gm_xp, -1, 0)     # grad_mag[i-1, j+1]
    shifted[3] = _roll(gm_xm, 1, 0)      # grad_mag[i+1, j-1]
    shifted[5] = _roll(gm_xm, -1, 0)     # grad_mag[i-1, j-1]

    # Per-pixel channel selection (the PyTorch flat gather as an 8-way select);
    # the negative direction is (idx_pos + 4) % 8, so it reuses the same masks.
    pos_sel = jnp.zeros_like(grad_mag)
    neg_sel = jnp.zeros_like(grad_mag)
    for k in range(8):
        m = idx_pos == k
        pos_sel = jnp.where(m, grad_mag - shifted[k], pos_sel)
        neg_sel = jnp.where(m, grad_mag - shifted[(k + 4) & 7], neg_sel)

    is_max = jnp.minimum(pos_sel, neg_sel) > 0.0
    thin = jnp.where(is_max, grad_mag, 0.0)

    # ---- write only the interior T rows of this band -------------------------
    sl = slice(_HALO, _HALO + T)
    gm_i = grad_mag[sl]
    thin_i = thin[sl]
    mag_ref[...] = gm_i
    ori_ref[...] = ori[sl]
    thin_ref[...] = thin_i
    thresh_ref[...] = jnp.where(thin_i < threshold, 0.0, thin_i)
    early_ref[...] = jnp.where(gm_i < threshold, 0.0, gm_i)


def _round_up(v, m):
    return ((v + m - 1) // m) * m


def _pick_tile(H, Wp):
    """Largest row band (multiple of 8) whose live footprint sits comfortably in
    this generation's VMEM, plus a matching scoped-VMEM limit."""
    try:
        cap = int(pltpu.get_tpu_info().vmem_capacity_bytes)
    except Exception:
        cap = 64 * 1024 * 1024          # conservative default (v7x-sized)
    # ~60 live f32 "plane-rows" per band row: input band + double-buffered
    # output blocks + stencil temporaries, all Wp lanes wide.
    row_bytes = 60 * 4 * Wp
    t = (int(0.35 * cap) // row_bytes) // 8 * 8
    t = int(max(8, min(t, 512, _round_up(H, 8))))
    est = row_bytes * (t + 2 * _HALO)
    vmem_limit = int(min(0.85 * cap, max(2 * est, 32 * 1024 * 1024)))
    return t, vmem_limit


@jax.jit
def canny_net_forward(img, threshold=10.0):
    """img: [1, 3, H, W] float32 (NCHW; batch must be 1, like the torch Net)."""
    assert img.ndim == 4 and img.shape[0] == 1 and img.shape[1] == 3
    x = img[0].astype(jnp.float32)                             # (3, H, W)
    _, H, W = x.shape

    # Lane-dense columns: W -> multiple of 128 with >= 2 zero pad columns so
    # every horizontal stencil tap is a mask-free roll.
    # TODO(synk): when W % 128 == 0 this adds 128 dead lanes; a 2-column masked
    # fix-up for the wrap columns would avoid that for power-of-two widths.
    Wp = _round_up(W + 2, 128)
    T, vmem_limit = _pick_tile(H, Wp)
    Hg = _round_up(H, T)                                       # gridded rows
    n_bands = Hg // T
    Tb = T + 2 * _HALO

    # (3, Hg + 2*HALO, Wp): 4 zero halo rows above the image, (Hg - H) + 4 zero
    # rows below it, >= 2 zero pad columns on the right.
    xs = jnp.pad(x, ((0, 0), (_HALO, Hg - H + _HALO), (0, Wp - W)))
    thr = jnp.reshape(jnp.asarray(threshold, jnp.float32), (1,))

    kernel = functools.partial(_canny_kernel, H, W, T)

    outs = pl.pallas_call(
        kernel,
        grid=(n_bands,),
        out_shape=(
            jax.ShapeDtypeStruct((3, Hg, Wp), jnp.float32),    # blurred
            jax.ShapeDtypeStruct((Hg, Wp), jnp.float32),       # grad_mag
            jax.ShapeDtypeStruct((Hg, Wp), jnp.float32),       # grad_orientation
            jax.ShapeDtypeStruct((Hg, Wp), jnp.float32),       # thin_edges
            jax.ShapeDtypeStruct((Hg, Wp), jnp.float32),       # thresholded
            jax.ShapeDtypeStruct((Hg, Wp), jnp.float32),       # early_threshold
        ),
        in_specs=[
            pl.BlockSpec(memory_space=pltpu.MemorySpace.SMEM),  # threshold
            pl.BlockSpec(memory_space=pl.ANY),                  # padded image (HBM)
        ],
        out_specs=(
            pl.BlockSpec((3, T, Wp), lambda i: (0, i, 0)),
            pl.BlockSpec((T, Wp), lambda i: (i, 0)),
            pl.BlockSpec((T, Wp), lambda i: (i, 0)),
            pl.BlockSpec((T, Wp), lambda i: (i, 0)),
            pl.BlockSpec((T, Wp), lambda i: (i, 0)),
            pl.BlockSpec((T, Wp), lambda i: (i, 0)),
        ),
        scratch_shapes=[
            pltpu.VMEM((3, Tb, Wp), jnp.float32),   # input band (with halo)
            pltpu.SemaphoreType.DMA,                # its DMA completion sem
        ],
        compiler_params=pltpu.CompilerParams(
            dimension_semantics=("parallel",),
            vmem_limit_bytes=vmem_limit),
    )(thr, xs)

    blurred_p, gmag, ori, thin, thrs, early = outs
    blurred = blurred_p[:, :H, :W][None]                       # [1, 3, H, W]
    crop = lambda a: a[:H, :W][None, None]                     # [1, 1, H, W]
    return (blurred, crop(gmag), crop(ori), crop(thin), crop(thrs), crop(early))


if __name__ == "__main__":
    key = jax.random.PRNGKey(0)
    img = jax.random.uniform(key, (1, 3, 16, 16), dtype=jnp.float32) * 255.0

    outs = canny_net_forward(img)
    jax.block_until_ready(outs)

    blurred, grad_mag, grad_ori, thin_edges, thresholded, early_threshold = outs
    assert blurred.shape == (1, 3, 16, 16)
    for o in (grad_mag, grad_ori, thin_edges, thresholded, early_threshold):
        assert o.shape == (1, 1, 16, 16)
        assert o.dtype == jnp.float32

    print("KERNEL_OK")
</pallas_src>

<mosaic_0001>
module attributes {stable_mosaic.version = 11 : i64} {
  func.func @_canny_kernel(%arg0: i32, %arg1: memref<1xf32, #tpu.memory_space<smem>>, %arg2: memref<3x24x128xf32, #tpu.memory_space<any>>, %arg3: memref<3x16x128xf32, #tpu.memory_space<vmem>>, %arg4: memref<16x128xf32, #tpu.memory_space<vmem>>, %arg5: memref<16x128xf32, #tpu.memory_space<vmem>>, %arg6: memref<16x128xf32, #tpu.memory_space<vmem>>, %arg7: memref<16x128xf32, #tpu.memory_space<vmem>>, %arg8: memref<16x128xf32, #tpu.memory_space<vmem>>, %arg9: memref<3x24x128xf32, #tpu.memory_space<vmem>>, %arg10: memref<!tpu.dma_semaphore, #tpu.memory_space<semaphore_mem>>) attributes {dimension_semantics = [#tpu.dimension_semantics<parallel>], iteration_bounds = array<i64: 1>, scalar_prefetch = 0 : i64, scratch_operands = 2 : i64, tpu.core_type = #tpu.core_type<tc>, window_params = [{transform_indices = @transform_0, window_bounds = array<i64: 1>}, {}, {transform_indices = @transform_2, window_bounds = array<i64: 3, 16, 128>}, {transform_indices = @transform_3, window_bounds = array<i64: 16, 128>}, {transform_indices = @transform_4, window_bounds = array<i64: 16, 128>}, {transform_indices = @transform_5, window_bounds = array<i64: 16, 128>}, {transform_indices = @transform_6, window_bounds = array<i64: 16, 128>}, {transform_indices = @transform_7, window_bounds = array<i64: 16, 128>}]} {
    %c0 = arith.constant 0 : index
    %0 = memref.load %arg1[%c0] : memref<1xf32, #tpu.memory_space<smem>>
    %c16_i32 = arith.constant 16 : i32
    %1 = arith.muli %arg0, %c16_i32 : i32
    %2 = tpu.assume_multiple %1, 8 : i32
    %c0_i32 = arith.constant 0 : i32
    %c0_i32_0 = arith.constant 0 : i32
    %3 = tpu.memref_slice %arg2[%c0_i32, %2, %c0_i32_0] : memref<3x24x128xf32, #tpu.memory_space<any>> -> memref<3x24x128xf32, #tpu.memory_space<any>>
    tpu.enqueue_dma source(%3 : memref<3x24x128xf32, #tpu.memory_space<any>>) target(%arg9 : memref<3x24x128xf32, #tpu.memory_space<vmem>>) target_semaphore(%arg10 : memref<!tpu.dma_semaphore, #tpu.memory_space<semaphore_mem>>)
    %c0_i32_1 = arith.constant 0 : i32
    %c0_i32_2 = arith.constant 0 : i32
    %4 = tpu.memref_slice %arg2[%c0_i32_1, %2, %c0_i32_2] : memref<3x24x128xf32, #tpu.memory_space<any>> -> memref<3x24x128xf32, #tpu.memory_space<any>>
    tpu.wait_dma2 semaphore(%arg10 : memref<!tpu.dma_semaphore, #tpu.memory_space<semaphore_mem>>) src(%4 : memref<3x24x128xf32, #tpu.memory_space<any>>) dst(%arg9 : memref<3x24x128xf32, #tpu.memory_space<vmem>>)
    %c0_3 = arith.constant 0 : index
    %c0_4 = arith.constant 0 : index
    %c0_5 = arith.constant 0 : index
    %5 = vector.load %arg9[%c0_3, %c0_4, %c0_5] : memref<3x24x128xf32, #tpu.memory_space<vmem>>, vector<3x24x128xf32>
    %6 = vector.shape_cast %5 : vector<3x24x128xf32> to vector<72x128xf32>
    %7 = tpu.iota {dimensions = array<i32: 0>} : vector<24x1xi32>
    %c16_i32_6 = arith.constant 16 : i32
    %8 = arith.muli %arg0, %c16_i32_6 : i32
    %c4_i32 = arith.constant 4 : i32
    %9 = arith.subi %8, %c4_i32 : i32
    %10 = vector.broadcast %9 : i32 to vector<24x1xi32>
    %11 = arith.addi %7, %10 : vector<24x1xi32>
    %c0_i32_7 = arith.constant 0 : i32
    %12 = vector.broadcast %c0_i32_7 : i32 to vector<24x1xi32>
    %13 = arith.cmpi sge, %11, %12 : vector<24x1xi32>
    %c16_i32_8 = arith.constant 16 : i32
    %14 = vector.broadcast %c16_i32_8 : i32 to vector<24x1xi32>
    %15 = arith.cmpi slt, %11, %14 : vector<24x1xi32>
    %16 = arith.andi %13, %15 : vector<24x1xi1>
    %17 = tpu.iota {dimensions = array<i32: 1>} : vector<1x128xi32>
    %c16_i32_9 = arith.constant 16 : i32
    %18 = vector.broadcast %c16_i32_9 : i32 to vector<1x128xi32>
    %19 = arith.cmpi slt, %17, %18 : vector<1x128xi32>
    %20 = tpu.concatenate %16, %16, %16 in 0 : vector<24x1xi1>, vector<24x1xi1>, vector<24x1xi1> -> vector<72x1xi1>
    %cst = arith.constant 1.000000e+00 : f32
    %21 = vector.broadcast %cst : f32 to vector<72x128xf32>
    %22 = arith.mulf %21, %6 : vector<72x128xf32>
    %c2_i32 = arith.constant 2 : i32
    %23 = tpu.dynamic_rotate %6 by %c2_i32 dim 1 : vector<72x128xf32>, i32 -> vector<72x128xf32>
    %cst_10 = arith.constant 0.135335281 : f32
    %24 = vector.broadcast %cst_10 : f32 to vector<72x128xf32>
    %25 = arith.mulf %24, %23 : vector<72x128xf32>
    %26 = arith.addf %22, %25 : vector<72x128xf32>
    %c1_i32 = arith.constant 1 : i32
    %27 = tpu.dynamic_rotate %6 by %c1_i32 dim 1 : vector<72x128xf32>, i32 -> vector<72x128xf32>
    %cst_11 = arith.constant 0.606530666 : f32
    %28 = vector.broadcast %cst_11 : f32 to vector<72x128xf32>
    %29 = arith.mulf %28, %27 : vector<72x128xf32>
    %30 = arith.addf %26, %29 : vector<72x128xf32>
    %c127_i32 = arith.constant 127 : i32
    %31 = tpu.dynamic_rotate %6 by %c127_i32 dim 1 : vector<72x128xf32>, i32 -> vector<72x128xf32>
    %cst_12 = arith.constant 0.606530666 : f32
    %32 = vector.broadcast %cst_12 : f32 to vector<72x128xf32>
    %33 = arith.mulf %32, %31 : vector<72x128xf32>
    %34 = arith.addf %30, %33 : vector<72x128xf32>
    %c126_i32 = arith.constant 126 : i32
    %35 = tpu.dynamic_rotate %6 by %c126_i32 dim 1 : vector<72x128xf32>, i32 -> vector<72x128xf32>
    %cst_13 = arith.constant 0.135335281 : f32
    %36 = vector.broadcast %cst_13 : f32 to vector<72x128xf32>
    %37 = arith.mulf %36, %35 : vector<72x128xf32>
    %38 = arith.addf %34, %37 : vector<72x128xf32>
    %cst_14 = arith.constant 1.000000e+00 : f32
    %39 = vector.broadcast %cst_14 : f32 to vector<72x128xf32>
    %40 = arith.mulf %39, %38 : vector<72x128xf32>
    %c2_i32_15 = arith.constant 2 : i32
    %41 = tpu.dynamic_rotate %38 by %c2_i32_15 dim 0 : vector<72x128xf32>, i32 -> vector<72x128xf32>
    %cst_16 = arith.constant 0.135335281 : f32
    %42 = vector.broadcast %cst_16 : f32 to vector<72x128xf32>
    %43 = arith.mulf %42, %41 : vector<72x128xf32>
    %44 = arith.addf %40, %43 : vector<72x128xf32>
    %c1_i32_17 = arith.constant 1 : i32
    %45 = tpu.dynamic_rotate %38 by %c1_i32_17 dim 0 : vector<72x128xf32>, i32 -> vector<72x128xf32>
    %cst_18 = arith.constant 0.606530666 : f32
    %46 = vector.broadcast %cst_18 : f32 to vector<72x128xf32>
    %47 = arith.mulf %46, %45 : vector<72x128xf32>
    %48 = arith.addf %44, %47 : vector<72x128xf32>
    %c71_i32 = arith.constant 71 : i32
    %49 = tpu.dynamic_rotate %38 by %c71_i32 dim 0 : vector<72x128xf32>, i32 -> vector<72x128xf32>
    %cst_19 = arith.constant 0.606530666 : f32
    %50 = vector.broadcast %cst_19 : f32 to vector<72x128xf32>
    %51 = arith.mulf %50, %49 : vector<72x128xf32>
    %52 = arith.addf %48, %51 : vector<72x128xf32>
    %c70_i32 = arith.constant 70 : i32
    %53 = tpu.dynamic_rotate %38 by %c70_i32 dim 0 : vector<72x128xf32>, i32 -> vector<72x128xf32>
    %cst_20 = arith.constant 0.135335281 : f32
    %54 = vector.broadcast %cst_20 : f32 to vector<72x128xf32>
    %55 = arith.mulf %54, %53 : vector<72x128xf32>
    %56 = arith.addf %52, %55 : vector<72x128xf32>
    %57 = vector.broadcast %20 : vector<72x1xi1> to vector<72x128xi1>
    %58 = vector.broadcast %19 : vector<1x128xi1> to vector<72x128xi1>
    %59 = arith.andi %57, %58 : vector<72x128xi1>
    %cst_21 = arith.constant 0.000000e+00 : f32
    %60 = vector.broadcast %cst_21 : f32 to vector<72x128xf32>
    %61 = arith.select %59, %56, %60 : vector<72x128xi1>, vector<72x128xf32>
    %62 = vector.extract_strided_slice %61 {offsets = [4, 0], sizes = [16, 128], strides = [1, 1]} : vector<72x128xf32> to vector<16x128xf32>
    %c0_22 = arith.constant 0 : index
    %c0_23 = arith.constant 0 : index
    %c0_24 = arith.constant 0 : index
    %63 = vector.load %arg3[%c0_22, %c0_23, %c0_24] : memref<3x16x128xf32, #tpu.memory_space<vmem>>, vector<1x16x128xf32>
    %64 = vector.shape_cast %63 : vector<1x16x128xf32> to vector<16x128xf32>
    %65 = vector.shape_cast %62 : vector<16x128xf32> to vector<1x16x128xf32>
    tpu.vector_store %arg3[%c0_22, %c0_23, %c0_24], %65 {strides = array<i32>} : memref<3x16x128xf32, #tpu.memory_space<vmem>>, vector<1x16x128xf32>,
    %66 = vector.extract_strided_slice %61 {offsets = [28, 0], sizes = [16, 128], strides = [1, 1]} : vector<72x128xf32> to vector<16x128xf32>
    %c1 = arith.constant 1 : index
    %c0_25 = arith.constant 0 : index
    %c0_26 = arith.constant 0 : index
    %67 = vector.load %arg3[%c1, %c0_25, %c0_26] : memref<3x16x128xf32, #tpu.memory_space<vmem>>, vector<1x16x128xf32>
    %68 = vector.shape_cast %67 : vector<1x16x128xf32> to vector<16x128xf32>
    %69 = vector.shape_cast %66 : vector<16x128xf32> to vector<1x16x128xf32>
    tpu.vector_store %arg3[%c1, %c0_25, %c0_26], %69 {strides = array<i32>} : memref<3x16x128xf32, #tpu.memory_space<vmem>>, vector<1x16x128xf32>,
    %70 = vector.extract_strided_slice %61 {offsets = [52, 0], sizes = [16, 128], strides = [1, 1]} : vector<72x128xf32> to vector<16x128xf32>
    %c2 = arith.constant 2 : index
    %c0_27 = arith.constant 0 : index
    %c0_28 = arith.constant 0 : index
    %71 = vector.load %arg3[%c2, %c0_27, %c0_28] : memref<3x16x128xf32, #tpu.memory_space<vmem>>, vector<1x16x128xf32>
    %72 = vector.shape_cast %71 : vector<1x16x128xf32> to vector<16x128xf32>
    %73 = vector.shape_cast %70 : vector<16x128xf32> to vector<1x16x128xf32>
    tpu.vector_store %arg3[%c2, %c0_27, %c0_28], %73 {strides = array<i32>} : memref<3x16x128xf32, #tpu.memory_space<vmem>>, vector<1x16x128xf32>,
    %c1_i32_29 = arith.constant 1 : i32
    %74 = tpu.dynamic_rotate %61 by %c1_i32_29 dim 1 : vector<72x128xf32>, i32 -> vector<72x128xf32>
    %c127_i32_30 = arith.constant 127 : i32
    %75 = tpu.dynamic_rotate %61 by %c127_i32_30 dim 1 : vector<72x128xf32>, i32 -> vector<72x128xf32>
    %76 = arith.subf %74, %75 : vector<72x128xf32>
    %c1_i32_31 = arith.constant 1 : i32
    %77 = tpu.dynamic_rotate %76 by %c1_i32_31 dim 0 : vector<72x128xf32>, i32 -> vector<72x128xf32>
    %cst_32 = arith.constant 2.000000e+00 : f32
    %78 = vector.broadcast %cst_32 : f32 to vector<72x128xf32>
    %79 = arith.mulf %78, %76 : vector<72x128xf32>
    %80 = arith.addf %77, %79 : vector<72x128xf32>
    %c71_i32_33 = arith.constant 71 : i32
    %81 = tpu.dynamic_rotate %76 by %c71_i32_33 dim 0 : vector<72x128xf32>, i32 -> vector<72x128xf32>
    %82 = arith.addf %80, %81 : vector<72x128xf32>
    %c1_i32_34 = arith.constant 1 : i32
    %83 = tpu.dynamic_rotate %61 by %c1_i32_34 dim 0 : vector<72x128xf32>, i32 -> vector<72x128xf32>
    %c71_i32_35 = arith.constant 71 : i32
    %84 = tpu.dynamic_rotate %61 by %c71_i32_35 dim 0 : vector<72x128xf32>, i32 -> vector<72x128xf32>
    %85 = arith.subf %83, %84 : vector<72x128xf32>
    %c1_i32_36 = arith.constant 1 : i32
    %86 = tpu.dynamic_rotate %85 by %c1_i32_36 dim 1 : vector<72x128xf32>, i32 -> vector<72x128xf32>
    %cst_37 = arith.constant 2.000000e+00 : f32
    %87 = vector.broadcast %cst_37 : f32 to vector<72x128xf32>
    %88 = arith.mulf %87, %85 : vector<72x128xf32>
    %89 = arith.addf %86, %88 : vector<72x128xf32>
    %c127_i32_38 = arith.constant 127 : i32
    %90 = tpu.dynamic_rotate %85 by %c127_i32_38 dim 1 : vector<72x128xf32>, i32 -> vector<72x128xf32>
    %91 = arith.addf %89, %90 : vector<72x128xf32>
    %92 = arith.mulf %82, %82 : vector<72x128xf32>
    %93 = arith.mulf %91, %91 : vector<72x128xf32>
    %94 = arith.addf %92, %93 : vector<72x128xf32>
    %95 = math.sqrt %94 : vector<72x128xf32>
    %96 = vector.extract_strided_slice %95 {offsets = [0, 0], sizes = [24, 128], strides = [1, 1]} : vector<72x128xf32> to vector<24x128xf32>
    %97 = vector.extract_strided_slice %95 {offsets = [24, 0], sizes = [24, 128], strides = [1, 1]} : vector<72x128xf32> to vector<24x128xf32>
    %98 = arith.addf %96, %97 : vector<24x128xf32>
    %99 = vector.extract_strided_slice %95 {offsets = [48, 0], sizes = [24, 128], strides = [1, 1]} : vector<72x128xf32> to vector<24x128xf32>
    %100 = arith.addf %98, %99 : vector<24x128xf32>
    %101 = vector.extract_strided_slice %82 {offsets = [0, 0], sizes = [24, 128], strides = [1, 1]} : vector<72x128xf32> to vector<24x128xf32>
    %102 = vector.extract_strided_slice %82 {offsets = [24, 0], sizes = [24, 128], strides = [1, 1]} : vector<72x128xf32> to vector<24x128xf32>
    %103 = arith.addf %101, %102 : vector<24x128xf32>
    %104 = vector.extract_strided_slice %82 {offsets = [48, 0], sizes = [24, 128], strides = [1, 1]} : vector<72x128xf32> to vector<24x128xf32>
    %105 = arith.addf %103, %104 : vector<24x128xf32>
    %106 = vector.extract_strided_slice %91 {offsets = [0, 0], sizes = [24, 128], strides = [1, 1]} : vector<72x128xf32> to vector<24x128xf32>
    %107 = vector.extract_strided_slice %91 {offsets = [24, 0], sizes = [24, 128], strides = [1, 1]} : vector<72x128xf32> to vector<24x128xf32>
    %108 = arith.addf %106, %107 : vector<24x128xf32>
    %109 = vector.extract_strided_slice %91 {offsets = [48, 0], sizes = [24, 128], strides = [1, 1]} : vector<72x128xf32> to vector<24x128xf32>
    %110 = arith.addf %108, %109 : vector<24x128xf32>
    %111 = vector.broadcast %16 : vector<24x1xi1> to vector<24x128xi1>
    %112 = vector.broadcast %19 : vector<1x128xi1> to vector<24x128xi1>
    %113 = arith.andi %111, %112 : vector<24x128xi1>
    %cst_39 = arith.constant 0.000000e+00 : f32
    %114 = vector.broadcast %cst_39 : f32 to vector<24x128xf32>
    %115 = arith.select %113, %100, %114 : vector<24x128xi1>, vector<24x128xf32>
    %116 = math.absf %105 : vector<24x128xf32>
    %117 = math.absf %110 : vector<24x128xf32>
    %cst_40 = arith.constant 0.414213181 : f32
    %118 = vector.broadcast %cst_40 : f32 to vector<24x128xf32>
    %119 = arith.mulf %118, %116 : vector<24x128xf32>
    %120 = arith.cmpf ole, %117, %119 : vector<24x128xf32>
    %cst_41 = arith.constant 2.41420674 : f32
    %121 = vector.broadcast %cst_41 : f32 to vector<24x128xf32>
    %122 = arith.mulf %121, %116 : vector<24x128xf32>
    %123 = arith.cmpf oge, %117, %122 : vector<24x128xf32>
    %cst_42 = arith.constant 0.000000e+00 : f32
    %124 = vector.broadcast %cst_42 : f32 to vector<24x128xf32>
    %125 = arith.cmpf oge, %105, %124 : vector<24x128xf32>
    %cst_43 = arith.constant 0.000000e+00 : f32
    %126 = vector.broadcast %cst_43 : f32 to vector<24x128xf32>
    %127 = arith.cmpf oge, %110, %126 : vector<24x128xf32>
    %c8_i32 = arith.constant 8 : i32
    %c0_i32_44 = arith.constant 0 : i32
    %128 = vector.broadcast %c8_i32 : i32 to vector<24x128xi32>
    %129 = vector.broadcast %c0_i32_44 : i32 to vector<24x128xi32>
    %130 = arith.select %127, %128, %129 : vector<24x128xi1>, vector<24x128xi32>
    %c4_i32_45 = arith.constant 4 : i32
    %131 = vector.broadcast %c4_i32_45 : i32 to vector<24x128xi32>
    %132 = arith.select %125, %131, %130 : vector<24x128xi1>, vector<24x128xi32>
    %c6_i32 = arith.constant 6 : i32
    %c2_i32_46 = arith.constant 2 : i32
    %133 = vector.broadcast %c6_i32 : i32 to vector<24x128xi32>
    %134 = vector.broadcast %c2_i32_46 : i32 to vector<24x128xi32>
    %135 = arith.select %127, %133, %134 : vector<24x128xi1>, vector<24x128xi32>
    %c5_i32 = arith.constant 5 : i32
    %c7_i32 = arith.constant 7 : i32
    %136 = vector.broadcast %c5_i32 : i32 to vector<24x128xi32>
    %137 = vector.broadcast %c7_i32 : i32 to vector<24x128xi32>
    %138 = arith.select %125, %136, %137 : vector<24x128xi1>, vector<24x128xi32>
    %c3_i32 = arith.constant 3 : i32
    %c1_i32_47 = arith.constant 1 : i32
    %139 = vector.broadcast %c3_i32 : i32 to vector<24x128xi32>
    %140 = vector.broadcast %c1_i32_47 : i32 to vector<24x128xi32>
    %141 = arith.select %125, %139, %140 : vector<24x128xi1>, vector<24x128xi32>
    %142 = arith.select %127, %138, %141 : vector<24x128xi1>, vector<24x128xi32>
    %143 = arith.select %123, %135, %142 : vector<24x128xi1>, vector<24x128xi32>
    %144 = arith.select %120, %132, %143 : vector<24x128xi1>, vector<24x128xi32>
    %145 = arith.sitofp %144 : vector<24x128xi32> to vector<24x128xf32>
    %cst_48 = arith.constant 4.500000e+01 : f32
    %146 = vector.broadcast %cst_48 : f32 to vector<24x128xf32>
    %147 = arith.mulf %146, %145 : vector<24x128xf32>
    %c7_i32_49 = arith.constant 7 : i32
    %148 = vector.broadcast %c7_i32_49 : i32 to vector<24x128xi32>
    %149 = arith.andi %144, %148 : vector<24x128xi32>
    %c127_i32_50 = arith.constant 127 : i32
    %150 = tpu.dynamic_rotate %115 by %c127_i32_50 dim 1 : vector<24x128xf32>, i32 -> vector<24x128xf32>
    %c1_i32_51 = arith.constant 1 : i32
    %151 = tpu.dynamic_rotate %115 by %c1_i32_51 dim 1 : vector<24x128xf32>, i32 -> vector<24x128xf32>
    %c23_i32 = arith.constant 23 : i32
    %152 = tpu.dynamic_rotate %115 by %c23_i32 dim 0 : vector<24x128xf32>, i32 -> vector<24x128xf32>
    %c1_i32_52 = arith.constant 1 : i32
    %153 = tpu.dynamic_rotate %115 by %c1_i32_52 dim 0 : vector<24x128xf32>, i32 -> vector<24x128xf32>
    %c23_i32_53 = arith.constant 23 : i32
    %154 = tpu.dynamic_rotate %150 by %c23_i32_53 dim 0 : vector<24x128xf32>, i32 -> vector<24x128xf32>
    %c1_i32_54 = arith.constant 1 : i32
    %155 = tpu.dynamic_rotate %150 by %c1_i32_54 dim 0 : vector<24x128xf32>, i32 -> vector<24x128xf32>
    %c23_i32_55 = arith.constant 23 : i32
    %156 = tpu.dynamic_rotate %151 by %c23_i32_55 dim 0 : vector<24x128xf32>, i32 -> vector<24x128xf32>
    %c1_i32_56 = arith.constant 1 : i32
    %157 = tpu.dynamic_rotate %151 by %c1_i32_56 dim 0 : vector<24x128xf32>, i32 -> vector<24x128xf32>
    %cst_57 = arith.constant 0.000000e+00 : f32
    %158 = vector.broadcast %cst_57 : f32 to vector<24x128xf32>
    %cst_58 = arith.constant 0.000000e+00 : f32
    %159 = vector.broadcast %cst_58 : f32 to vector<24x128xf32>
    %c0_i32_59 = arith.constant 0 : i32
    %160 = vector.broadcast %c0_i32_59 : i32 to vector<24x128xi32>
    %161 = arith.cmpi eq, %149, %160 : vector<24x128xi32>
    %162 = arith.subf %115, %150 : vector<24x128xf32>
    %163 = arith.select %161, %162, %158 : vector<24x128xi1>, vector<24x128xf32>
    %164 = arith.subf %115, %151 : vector<24x128xf32>
    %165 = arith.select %161, %164, %159 : vector<24x128xi1>, vector<24x128xf32>
    %c1_i32_60 = arith.constant 1 : i32
    %166 = vector.broadcast %c1_i32_60 : i32 to vector<24x128xi32>
    %167 = arith.cmpi eq, %149, %166 : vector<24x128xi32>
    %168 = arith.subf %115, %154 : vector<24x128xf32>
    %169 = arith.select %167, %168, %163 : vector<24x128xi1>, vector<24x128xf32>
    %170 = arith.subf %115, %157 : vector<24x128xf32>
    %171 = arith.select %167, %170, %165 : vector<24x128xi1>, vector<24x128xf32>
    %c2_i32_61 = arith.constant 2 : i32
    %172 = vector.broadcast %c2_i32_61 : i32 to vector<24x128xi32>
    %173 = arith.cmpi eq, %149, %172 : vector<24x128xi32>
    %174 = arith.subf %115, %152 : vector<24x128xf32>
    %175 = arith.select %173, %174, %169 : vector<24x128xi1>, vector<24x128xf32>
    %176 = arith.subf %115, %153 : vector<24x128xf32>
    %177 = arith.select %173, %176, %171 : vector<24x128xi1>, vector<24x128xf32>
    %c3_i32_62 = arith.constant 3 : i32
    %178 = vector.broadcast %c3_i32_62 : i32 to vector<24x128xi32>
    %179 = arith.cmpi eq, %149, %178 : vector<24x128xi32>
    %180 = arith.subf %115, %156 : vector<24x128xf32>
    %181 = arith.select %179, %180, %175 : vector<24x128xi1>, vector<24x128xf32>
    %182 = arith.subf %115, %155 : vector<24x128xf32>
    %183 = arith.select %179, %182, %177 : vector<24x128xi1>, vector<24x128xf32>
    %c4_i32_63 = arith.constant 4 : i32
    %184 = vector.broadcast %c4_i32_63 : i32 to vector<24x128xi32>
    %185 = arith.cmpi eq, %149, %184 : vector<24x128xi32>
    %186 = arith.subf %115, %151 : vector<24x128xf32>
    %187 = arith.select %185, %186, %181 : vector<24x128xi1>, vector<24x128xf32>
    %188 = arith.subf %115, %150 : vector<24x128xf32>
    %189 = arith.select %185, %188, %183 : vector<24x128xi1>, vector<24x128xf32>
    %c5_i32_64 = arith.constant 5 : i32
    %190 = vector.broadcast %c5_i32_64 : i32 to vector<24x128xi32>
    %191 = arith.cmpi eq, %149, %190 : vector<24x128xi32>
    %192 = arith.subf %115, %157 : vector<24x128xf32>
    %193 = arith.select %191, %192, %187 : vector<24x128xi1>, vector<24x128xf32>
    %194 = arith.subf %115, %154 : vector<24x128xf32>
    %195 = arith.select %191, %194, %189 : vector<24x128xi1>, vector<24x128xf32>
    %c6_i32_65 = arith.constant 6 : i32
    %196 = vector.broadcast %c6_i32_65 : i32 to vector<24x128xi32>
    %197 = arith.cmpi eq, %149, %196 : vector<24x128xi32>
    %198 = arith.subf %115, %153 : vector<24x128xf32>
    %199 = arith.select %197, %198, %193 : vector<24x128xi1>, vector<24x128xf32>
    %200 = arith.subf %115, %152 : vector<24x128xf32>
    %201 = arith.select %197, %200, %195 : vector<24x128xi1>, vector<24x128xf32>
    %c7_i32_66 = arith.constant 7 : i32
    %202 = vector.broadcast %c7_i32_66 : i32 to vector<24x128xi32>
    %203 = arith.cmpi eq, %149, %202 : vector<24x128xi32>
    %204 = arith.subf %115, %155 : vector<24x128xf32>
    %205 = arith.select %203, %204, %199 : vector<24x128xi1>, vector<24x128xf32>
    %206 = arith.subf %115, %156 : vector<24x128xf32>
    %207 = arith.select %203, %206, %201 : vector<24x128xi1>, vector<24x128xf32>
    %208 = arith.minimumf %205, %207 : vector<24x128xf32>
    %cst_67 = arith.constant 0.000000e+00 : f32
    %209 = vector.broadcast %cst_67 : f32 to vector<24x128xf32>
    %210 = arith.cmpf ogt, %208, %209 : vector<24x128xf32>
    %cst_68 = arith.constant 0.000000e+00 : f32
    %211 = vector.broadcast %cst_68 : f32 to vector<24x128xf32>
    %212 = arith.select %210, %115, %211 : vector<24x128xi1>, vector<24x128xf32>
    %213 = vector.extract_strided_slice %115 {offsets = [4, 0], sizes = [16, 128], strides = [1, 1]} : vector<24x128xf32> to vector<16x128xf32>
    %214 = vector.extract_strided_slice %212 {offsets = [4, 0], sizes = [16, 128], strides = [1, 1]} : vector<24x128xf32> to vector<16x128xf32>
    %c0_69 = arith.constant 0 : index
    %c0_70 = arith.constant 0 : index
    %215 = vector.load %arg4[%c0_69, %c0_70] : memref<16x128xf32, #tpu.memory_space<vmem>>, vector<16x128xf32>
    tpu.vector_store %arg4[%c0_69, %c0_70], %213 {strides = array<i32>} : memref<16x128xf32, #tpu.memory_space<vmem>>, vector<16x128xf32>,
    %216 = vector.extract_strided_slice %147 {offsets = [4, 0], sizes = [16, 128], strides = [1, 1]} : vector<24x128xf32> to vector<16x128xf32>
    %c0_71 = arith.constant 0 : index
    %c0_72 = arith.constant 0 : index
    %217 = vector.load %arg5[%c0_71, %c0_72] : memref<16x128xf32, #tpu.memory_space<vmem>>, vector<16x128xf32>
    tpu.vector_store %arg5[%c0_71, %c0_72], %216 {strides = array<i32>} : memref<16x128xf32, #tpu.memory_space<vmem>>, vector<16x128xf32>,
    %c0_73 = arith.constant 0 : index
    %c0_74 = arith.constant 0 : index
    %218 = vector.load %arg6[%c0_73, %c0_74] : memref<16x128xf32, #tpu.memory_space<vmem>>, vector<16x128xf32>
    tpu.vector_store %arg6[%c0_73, %c0_74], %214 {strides = array<i32>} : memref<16x128xf32, #tpu.memory_space<vmem>>, vector<16x128xf32>,
    %219 = vector.broadcast %0 : f32 to vector<16x128xf32>
    %220 = arith.cmpf olt, %214, %219 : vector<16x128xf32>
    %cst_75 = arith.constant 0.000000e+00 : f32
    %221 = vector.broadcast %cst_75 : f32 to vector<16x128xf32>
    %222 = arith.select %220, %221, %214 : vector<16x128xi1>, vector<16x128xf32>
    %c0_76 = arith.constant 0 : index
    %c0_77 = arith.constant 0 : index
    %223 = vector.load %arg7[%c0_76, %c0_77] : memref<16x128xf32, #tpu.memory_space<vmem>>, vector<16x128xf32>
    tpu.vector_store %arg7[%c0_76, %c0_77], %222 {strides = array<i32>} : memref<16x128xf32, #tpu.memory_space<vmem>>, vector<16x128xf32>,
    %224 = vector.broadcast %0 : f32 to vector<16x128xf32>
    %225 = arith.cmpf olt, %213, %224 : vector<16x128xf32>
    %cst_78 = arith.constant 0.000000e+00 : f32
    %226 = vector.broadcast %cst_78 : f32 to vector<16x128xf32>
    %227 = arith.select %225, %226, %213 : vector<16x128xi1>, vector<16x128xf32>
    %c0_79 = arith.constant 0 : index
    %c0_80 = arith.constant 0 : index
    %228 = vector.load %arg8[%c0_79, %c0_80] : memref<16x128xf32, #tpu.memory_space<vmem>>, vector<16x128xf32>
    tpu.vector_store %arg8[%c0_79, %c0_80], %227 {strides = array<i32>} : memref<16x128xf32, #tpu.memory_space<vmem>>, vector<16x128xf32>,
    return
  }
  func.func @transform_0(%arg0: i32) -> i32 {
    %c0_i32 = arith.constant 0 : i32
    %c0_i32_0 = arith.constant 0 : i32
    return %c0_i32 : i32
  }
  func.func @transform_2(%arg0: i32) -> (i32, i32, i32) {
    %c0_i32 = arith.constant 0 : i32
    %c0_i32_0 = arith.constant 0 : i32
    %c0_i32_1 = arith.constant 0 : i32
    return %c0_i32, %arg0, %c0_i32_0 : i32, i32, i32
  }
  func.func @transform_3(%arg0: i32) -> (i32, i32) {
    %c0_i32 = arith.constant 0 : i32
    %c0_i32_0 = arith.constant 0 : i32
    return %arg0, %c0_i32 : i32, i32
  }
  func.func @transform_4(%arg0: i32) -> (i32, i32) {
    %c0_i32 = arith.constant 0 : i32
    %c0_i32_0 = arith.constant 0 : i32
    return %arg0, %c0_i32 : i32, i32
  }
  func.func @transform_5(%arg0: i32) -> (i32, i32) {
    %c0_i32 = arith.constant 0 : i32
    %c0_i32_0 = arith.constant 0 : i32
    return %arg0, %c0_i32 : i32, i32
  }
  func.func @transform_6(%arg0: i32) -> (i32, i32) {
    %c0_i32 = arith.constant 0 : i32
    %c0_i32_0 = arith.constant 0 : i32
    return %arg0, %c0_i32 : i32, i32
  }
  func.func @transform_7(%arg0: i32) -> (i32, i32) {
    %c0_i32 = arith.constant 0 : i32
    %c0_i32_0 = arith.constant 0 : i32
    return %arg0, %c0_i32 : i32, i32
  }
}

</mosaic_0001>

<llo_original>
// kernel: canny_net_forward.1
$region0: #{canny_net_forward.1}
  #allocation0 [shape = 'u32[]', space=smem, size = 0x4, offset = 0x4, fixed_abs, tag = 'smem constant byte address 0x4 - core index']
  #allocation1 [shape = 'u32[144,128]{1,0:T(1,128)}', space=vmem, size = 0x12000, scoped, tag = 'internal scratch']
  #allocation2 [shape = 'f32[3,24,128]{2,1,0:T(8,128)}', space=vmem, size = 0x9000, scoped, tag = 'scratch operand']
  #allocation3 [shape = 's32[1]{0}', space=sflag, size = 0x4, scoped, tag = 'scratch operand']
  #allocation4 [shape = 'f32[1]{0:T(128)S(6)}', space=smem, size = 0x200, scoped, tag = 'scoped memory for canny_net_forward.1']
  #allocation5 [shape = 's32[]', space=sflag, size = 0x4, offset = 0, fixed_abs, tag = 'sflag constant byte address 0x0 - dummy sync flag']
  %s0 = inlined_call_operand.<no memory space> [shape: f32[1], index: 0, kind: input, shape index: {}]
  %s1 = inlined_call_operand.vmem [shape: f32[3,24,128], index: 1, kind: input, shape index: {}]
  %s2 = inlined_call_operand.vmem [shape: f32[3,16,128], index: 2, kind: output, shape index: {0}]
  %s3 = inlined_call_operand.vmem [shape: f32[16,128], index: 3, kind: output, shape index: {1}]
  %s4 = inlined_call_operand.vmem [shape: f32[16,128], index: 4, kind: output, shape index: {2}]
  %s5 = inlined_call_operand.vmem [shape: f32[16,128], index: 5, kind: output, shape index: {3}]
  %s6 = inlined_call_operand.vmem [shape: f32[16,128], index: 6, kind: output, shape index: {4}]
  %s7 = inlined_call_operand.vmem [shape: f32[16,128], index: 7, kind: output, shape index: {5}]
  %8 = xla_tuple %s2, %s3, %s4, %s5, %s6, %s7
  %s9 = sld [smem:[#allocation0]]
  $region88: #{canny_net_forward.1} parent=0
    _
  %s11 = ssub.s32 1, %s9
  %s12 = scalar_select 0, %s11, %s9
  %13 = sst [smem:[#allocation4]] %s0
  // Predicated region
  $region2: #{canny_net_forward.1} parent=0 // pred_check
    _
  $region3: #{canny_net_forward.1} parent=0 // pred_check_branch
    %15 = sbr.rel (0) target = $region5
  $region4: #{canny_net_forward.1} parent=0 // pred_region
    _
  $region5: #{canny_net_forward.1} parent=0 // pred_fallthru
    _
  %s16 = sld [smem:[#allocation4]]
  %s17 = smul.u32 0, 16
  %s18 = scalar_lea.vmem %s1, %s17
  %p20 = scmp.lt.u32.totalorder 72, 8
  %p21 = pneg %p20
  // Predicated region
  $region6: #{canny_net_forward.1} parent=0 // pred_check
    _
  $region7: #{canny_net_forward.1} parent=0 // pred_check_branch
    %23 = sbr.rel (%p20) target = $region9
  $region8: #{canny_net_forward.1} parent=0 // pred_region
    %s39 = sand.u32 72, 7
    %p40 = scmp.eq.s32.totalorder %s39, 0
    // Predicated region
    $region21: #{canny_net_forward.1} parent=8 // pred_check
      %p41 = pneg %p40
    $region22: #{canny_net_forward.1} parent=8 // pred_check_branch
      %43 = sbr.rel (%p41) target = $region24
    $region23: #{canny_net_forward.1} parent=8 // pred_region
      loop: start=0, step=1, limit=1
      $region25: #{canny_net_forward.1} parent=23 // loop_pre_header
        _
      $region26: #{canny_net_forward.1} parent=23 // loop_header
        %s45 = sphi 0, %s49
        %p46 = scmp.ge.s32.totalorder %s45, 1
        %s50 = sphi %s18, %s18
        %s51 = sphi [#allocation2], [#allocation2]
      $region27: #{canny_net_forward.1} parent=23 // loop_header_branch
        %48 = sbr.rel (%p46) target = $region31
      $region28: #{canny_net_forward.1} parent=23 // loop_body
        %v52 = vld [vmem:[%s50] sm:$0xff]
        %53 = vst [vmem:[%s51] sm:$0xff] %v52
        %v54 = vld [vmem:[%s50 + $0x8] sm:$0xff]
        %55 = vst [vmem:[%s51 + $0x8] sm:$0xff] %v54
        %v56 = vld [vmem:[%s50 + $0x10] sm:$0xff]
        %57 = vst [vmem:[%s51 + $0x10] sm:$0xff] %v56
        %v58 = vld [vmem:[%s50 + $0x18] sm:$0xff]
        %59 = vst [vmem:[%s51 + $0x18] sm:$0xff] %v58
        %v60 = vld [vmem:[%s50 + $0x20] sm:$0xff]
        %61 = vst [vmem:[%s51 + $0x20] sm:$0xff] %v60
        %v62 = vld [vmem:[%s50 + $0x28] sm:$0xff]
        %63 = vst [vmem:[%s51 + $0x28] sm:$0xff] %v62
        %v64 = vld [vmem:[%s50 + $0x30] sm:$0xff]
        %65 = vst [vmem:[%s51 + $0x30] sm:$0xff] %v64
        %v66 = vld [vmem:[%s50 + $0x38] sm:$0xff]
        %67 = vst [vmem:[%s51 + $0x38] sm:$0xff] %v66
        %v68 = vld [vmem:[%s50 + $0x40] sm:$0xff]
        %69 = vst [vmem:[%s51 + $0x40] sm:$0xff] %v68
      $region29: #{canny_net_forward.1} parent=23 // loop_footer
        %s49 = sadd.s32 1, %s45
      $region30: #{canny_net_forward.1} parent=23 // loop_footer_branch
        %44 = sbr.rel target = $region26
      $region31: #{canny_net_forward.1} parent=23 // loop_exit
        _
    $region24: #{canny_net_forward.1} parent=8 // pred_fallthru
      _
    %p70 = pneg %p40
    // Predicated region
    $region32: #{canny_net_forward.1} parent=8 // pred_check
      _
    $region33: #{canny_net_forward.1} parent=8 // pred_check_branch
      %72 = sbr.rel (%p40) target = $region35
    $region34: #{canny_net_forward.1} parent=8 // pred_region
      %s73 = sand.u32 72, 7
    $region35: #{canny_net_forward.1} parent=8 // pred_fallthru
      _
  $region9: #{canny_net_forward.1} parent=0 // pred_fallthru
    _
  // Predicated region
  $region10: #{canny_net_forward.1} parent=0 // pred_check
    %p24 = pneg %p20
  $region11: #{canny_net_forward.1} parent=0 // pred_check_branch
    %26 = sbr.rel (%p24) target = $region13
  $region12: #{canny_net_forward.1} parent=0 // pred_region
    %s27 = sshll.u32 1, 72
    %s28 = ssub.s32 %s27, 1
    loop: start=0, step=1, limit=1
    $region14: #{canny_net_forward.1} parent=12 // loop_pre_header
      _
    $region15: #{canny_net_forward.1} parent=12 // loop_header
      %s30 = sphi 0, %s34
      %p31 = scmp.ge.s32.totalorder %s30, 1
      %s35 = sphi %s18, %s18
      %s36 = sphi [#allocation2], [#allocation2]
    $region16: #{canny_net_forward.1} parent=12 // loop_header_branch
      %33 = sbr.rel (%p31) target = $region20
    $region17: #{canny_net_forward.1} parent=12 // loop_body
      %v37 = vld [vmem:[%s35] sm:%s28]
      %38 = vst [vmem:[%s36] sm:%s28] %v37
    $region18: #{canny_net_forward.1} parent=12 // loop_footer
      %s34 = sadd.s32 1, %s30
    $region19: #{canny_net_forward.1} parent=12 // loop_footer_branch
      %29 = sbr.rel target = $region15
    $region20: #{canny_net_forward.1} parent=12 // loop_exit
      _
  $region13: #{canny_net_forward.1} parent=0 // pred_fallthru
    _
  // Predicated region
  $region36: #{canny_net_forward.1} parent=0 // pred_check
    _
  $region37: #{canny_net_forward.1} parent=0 // pred_check_branch
    %76 = sbr.rel (0) target = $region39
  $region38: #{canny_net_forward.1} parent=0 // pred_region
    %77 = vsyncadd [#allocation3], 1152
  $region39: #{canny_net_forward.1} parent=0 // pred_fallthru
    _
  %s78 = smul.u32 3, 24
  %s79 = smul.u32 %s78, 1
  %s80 = sshll.u32 %s79, 4
  %81 = dma.done [#allocation3], %s80
  %v82 = vld [vmem:[#allocation2] sm:$0xff]
  %v83 = vld [vmem:[#allocation2 + $0x8] sm:$0xff]
  %v84 = vld [vmem:[#allocation2 + $0x10] sm:$0xff]
  %v85 = vld [vmem:[#allocation2 + $0x18] sm:$0xff]
  %v86 = vld [vmem:[#allocation2 + $0x20] sm:$0xff]
  %v87 = vld [vmem:[#allocation2 + $0x28] sm:$0xff]
  %v88 = vld [vmem:[#allocation2 + $0x30] sm:$0xff]
  %v89 = vld [vmem:[#allocation2 + $0x38] sm:$0xff]
  %v90 = vld [vmem:[#allocation2 + $0x40] sm:$0xff]
  %v91 = vlaneseq
  %v92 = vshrl.u32 %v91, 7
  %v93 = vadd.s32 %v92, 8
  %v94 = vadd.s32 %v92, 16
  %s95 = ssub.s32 %s17, 4
  %v96 = vstv %s95
  %v97 = vadd.s32 %v92, %v96
  %v98 = vadd.s32 %v93, %v96
  %v99 = vadd.s32 %v94, %v96
  %vm100 = vcmp.ge.s32.totalorder %v97, 0
  %vm101 = vcmp.ge.s32.totalorder %v98, 0
  %vm102 = vcmp.ge.s32.totalorder %v99, 0
  %vm103 = vcmp.lt.s32.totalorder %v97, 16
  %vm104 = vcmp.lt.s32.totalorder %v98, 16
  %vm105 = vcmp.lt.s32.totalorder %v99, 16
  %vm106 = vmand %vm100, %vm103
  %vm107 = vmand %vm101, %vm104
  %vm108 = vmand %vm102, %vm105
  %v109 = vlaneseq
  %v110 = vand.u32 %v109, 127
  %vm111 = vcmp.lt.s32.totalorder %v110, 16
  %112 = vrot.lane.b32.xlu0 %v82, 2
  %v113 = vpop.permute.xlu0 %112
  %114 = vrot.lane.b32.xlu0 %v83, 2
  %v115 = vpop.permute.xlu0 %114
  %116 = vrot.lane.b32.xlu0 %v84, 2
  %v117 = vpop.permute.xlu0 %116
  %118 = vrot.lane.b32.xlu0 %v85, 2
  %v119 = vpop.permute.xlu0 %118
  %120 = vrot.lane.b32.xlu0 %v86, 2
  %v121 = vpop.permute.xlu0 %120
  %122 = vrot.lane.b32.xlu0 %v87, 2
  %v123 = vpop.permute.xlu0 %122
  %124 = vrot.lane.b32.xlu0 %v88, 2
  %v125 = vpop.permute.xlu0 %124
  %126 = vrot.lane.b32.xlu0 %v89, 2
  %v127 = vpop.permute.xlu0 %126
  %128 = vrot.lane.b32.xlu0 %v90, 2
  %v129 = vpop.permute.xlu0 %128
  %v130 = vmul.f32 %v113, 0.13533528
  %v131 = vmul.f32 %v115, 0.13533528
  %v132 = vmul.f32 %v117, 0.13533528
  %v133 = vmul.f32 %v119, 0.13533528
  %v134 = vmul.f32 %v121, 0.13533528
  %v135 = vmul.f32 %v123, 0.13533528
  %v136 = vmul.f32 %v125, 0.13533528
  %v137 = vmul.f32 %v127, 0.13533528
  %v138 = vmul.f32 %v129, 0.13533528
  %v139 = vadd.f32 %v82, %v130
  %v140 = vadd.f32 %v83, %v131
  %v141 = vadd.f32 %v84, %v132
  %v142 = vadd.f32 %v85, %v133
  %v143 = vadd.f32 %v86, %v134
  %v144 = vadd.f32 %v87, %v135
  %v145 = vadd.f32 %v88, %v136
  %v146 = vadd.f32 %v89, %v137
  %v147 = vadd.f32 %v90, %v138
  %148 = vrot.lane.b32.xlu0 %v82, 1
  %v149 = vpop.permute.xlu0 %148
  %150 = vrot.lane.b32.xlu0 %v83, 1
  %v151 = vpop.permute.xlu0 %150
  %152 = vrot.lane.b32.xlu0 %v84, 1
  %v153 = vpop.permute.xlu0 %152
  %154 = vrot.lane.b32.xlu0 %v85, 1
  %v155 = vpop.permute.xlu0 %154
  %156 = vrot.lane.b32.xlu0 %v86, 1
  %v157 = vpop.permute.xlu0 %156
  %158 = vrot.lane.b32.xlu0 %v87, 1
  %v159 = vpop.permute.xlu0 %158
  %160 = vrot.lane.b32.xlu0 %v88, 1
  %v161 = vpop.permute.xlu0 %160
  %162 = vrot.lane.b32.xlu0 %v89, 1
  %v163 = vpop.permute.xlu0 %162
  %164 = vrot.lane.b32.xlu0 %v90, 1
  %v165 = vpop.permute.xlu0 %164
  %v166 = vmul.f32 %v149, 0.60653067
  %v167 = vmul.f32 %v151, 0.60653067
  %v168 = vmul.f32 %v153, 0.60653067
  %v169 = vmul.f32 %v155, 0.60653067
  %v170 = vmul.f32 %v157, 0.60653067
  %v171 = vmul.f32 %v159, 0.60653067
  %v172 = vmul.f32 %v161, 0.60653067
  %v173 = vmul.f32 %v163, 0.60653067
  %v174 = vmul.f32 %v165, 0.60653067
  %v175 = vadd.f32 %v139, %v166
  %v176 = vadd.f32 %v140, %v167
  %v177 = vadd.f32 %v141, %v168
  %v178 = vadd.f32 %v142, %v169
  %v179 = vadd.f32 %v143, %v170
  %v180 = vadd.f32 %v144, %v171
  %v181 = vadd.f32 %v145, %v172
  %v182 = vadd.f32 %v146, %v173
  %v183 = vadd.f32 %v147, %v174
  %184 = vrot.lane.b32.xlu0 %v82, 127
  %v185 = vpop.permute.xlu0 %184
  %186 = vrot.lane.b32.xlu0 %v83, 127
  %v187 = vpop.permute.xlu0 %186
  %188 = vrot.lane.b32.xlu0 %v84, 127
  %v189 = vpop.permute.xlu0 %188
  %190 = vrot.lane.b32.xlu0 %v85, 127
  %v191 = vpop.permute.xlu0 %190
  %192 = vrot.lane.b32.xlu0 %v86, 127
  %v193 = vpop.permute.xlu0 %192
  %194 = vrot.lane.b32.xlu0 %v87, 127
  %v195 = vpop.permute.xlu0 %194
  %196 = vrot.lane.b32.xlu0 %v88, 127
  %v197 = vpop.permute.xlu0 %196
  %198 = vrot.lane.b32.xlu0 %v89, 127
  %v199 = vpop.permute.xlu0 %198
  %200 = vrot.lane.b32.xlu0 %v90, 127
  %v201 = vpop.permute.xlu0 %200
  %v202 = vmul.f32 %v185, 0.60653067
  %v203 = vmul.f32 %v187, 0.60653067
  %v204 = vmul.f32 %v189, 0.60653067
  %v205 = vmul.f32 %v191, 0.60653067
  %v206 = vmul.f32 %v193, 0.60653067
  %v207 = vmul.f32 %v195, 0.60653067
  %v208 = vmul.f32 %v197, 0.60653067
  %v209 = vmul.f32 %v199, 0.60653067
  %v210 = vmul.f32 %v201, 0.60653067
  %v211 = vadd.f32 %v175, %v202
  %v212 = vadd.f32 %v176, %v203
  %v213 = vadd.f32 %v177, %v204
  %v214 = vadd.f32 %v178, %v205
  %v215 = vadd.f32 %v179, %v206
  %v216 = vadd.f32 %v180, %v207
  %v217 = vadd.f32 %v181, %v208
  %v218 = vadd.f32 %v182, %v209
  %v219 = vadd.f32 %v183, %v210
  %220 = vrot.lane.b32.xlu0 %v82, 126
  %v221 = vpop.permute.xlu0 %220
  %222 = vrot.lane.b32.xlu0 %v83, 126
  %v223 = vpop.permute.xlu0 %222
  %224 = vrot.lane.b32.xlu0 %v84, 126
  %v225 = vpop.permute.xlu0 %224
  %226 = vrot.lane.b32.xlu0 %v85, 126
  %v227 = vpop.permute.xlu0 %226
  %228 = vrot.lane.b32.xlu0 %v86, 126
  %v229 = vpop.permute.xlu0 %228
  %230 = vrot.lane.b32.xlu0 %v87, 126
  %v231 = vpop.permute.xlu0 %230
  %232 = vrot.lane.b32.xlu0 %v88, 126
  %v233 = vpop.permute.xlu0 %232
  %234 = vrot.lane.b32.xlu0 %v89, 126
  %v235 = vpop.permute.xlu0 %234
  %236 = vrot.lane.b32.xlu0 %v90, 126
  %v237 = vpop.permute.xlu0 %236
  %v238 = vmul.f32 %v221, 0.13533528
  %v239 = vmul.f32 %v223, 0.13533528
  %v240 = vmul.f32 %v225, 0.13533528
  %v241 = vmul.f32 %v227, 0.13533528
  %v242 = vmul.f32 %v229, 0.13533528
  %v243 = vmul.f32 %v231, 0.13533528
  %v244 = vmul.f32 %v233, 0.13533528
  %v245 = vmul.f32 %v235, 0.13533528
  %v246 = vmul.f32 %v237, 0.13533528
  %v247 = vadd.f32 %v211, %v238
  %v248 = vadd.f32 %v212, %v239
  %v249 = vadd.f32 %v213, %v240
  %v250 = vadd.f32 %v214, %v241
  %v251 = vadd.f32 %v215, %v242
  %v252 = vadd.f32 %v216, %v243
  %v253 = vadd.f32 %v217, %v244
  %v254 = vadd.f32 %v218, %v245
  %v255 = vadd.f32 %v219, %v246
  %v256 = vrot.slane %v247, 6
  %v257 = vrot.slane %v248, 6
  %v258 = vrot.slane %v249, 6
  %v259 = vrot.slane %v250, 6
  %v260 = vrot.slane %v251, 6
  %v261 = vrot.slane %v252, 6
  %v262 = vrot.slane %v253, 6
  %v263 = vrot.slane %v254, 6
  %v264 = vrot.slane %v255, 6
  %vm265 = vcmp.lt.s32.totalorder %v92, 2
  %v266 = vsel %vm265, %v263, %v264
  %v267 = vsel %vm265, %v262, %v263
  %v268 = vsel %vm265, %v261, %v262
  %v269 = vsel %vm265, %v260, %v261
  %v270 = vsel %vm265, %v259, %v260
  %v271 = vsel %vm265, %v258, %v259
  %v272 = vsel %vm265, %v257, %v258
  %v273 = vsel %vm265, %v256, %v257
  %v274 = vsel %vm265, %v264, %v256
  %v275 = vmul.f32 %v274, 0.13533528
  %v276 = vmul.f32 %v273, 0.13533528
  %v277 = vmul.f32 %v272, 0.13533528
  %v278 = vmul.f32 %v271, 0.13533528
  %v279 = vmul.f32 %v270, 0.13533528
  %v280 = vmul.f32 %v269, 0.13533528
  %v281 = vmul.f32 %v268, 0.13533528
  %v282 = vmul.f32 %v267, 0.13533528
  %v283 = vmul.f32 %v266, 0.13533528
  %v284 = vadd.f32 %v247, %v275
  %v285 = vadd.f32 %v248, %v276
  %v286 = vadd.f32 %v249, %v277
  %v287 = vadd.f32 %v250, %v278
  %v288 = vadd.f32 %v251, %v279
  %v289 = vadd.f32 %v252, %v280
  %v290 = vadd.f32 %v253, %v281
  %v291 = vadd.f32 %v254, %v282
  %v292 = vadd.f32 %v255, %v283
  %v293 = vrot.slane %v247, 7
  %v294 = vrot.slane %v248, 7
  %v295 = vrot.slane %v249, 7
  %v296 = vrot.slane %v250, 7
  %v297 = vrot.slane %v251, 7
  %v298 = vrot.slane %v252, 7
  %v299 = vrot.slane %v253, 7
  %v300 = vrot.slane %v254, 7
  %v301 = vrot.slane %v255, 7
  %vm302 = vcmp.lt.s32.totalorder %v92, 1
  %v303 = vsel %vm302, %v300, %v301
  %v304 = vsel %vm302, %v299, %v300
  %v305 = vsel %vm302, %v298, %v299
  %v306 = vsel %vm302, %v297, %v298
  %v307 = vsel %vm302, %v296, %v297
  %v308 = vsel %vm302, %v295, %v296
  %v309 = vsel %vm302, %v294, %v295
  %v310 = vsel %vm302, %v293, %v294
  %v311 = vsel %vm302, %v301, %v293
  %v312 = vmul.f32 %v311, 0.60653067
  %v313 = vmul.f32 %v310, 0.60653067
  %v314 = vmul.f32 %v309, 0.60653067
  %v315 = vmul.f32 %v308, 0.60653067
  %v316 = vmul.f32 %v307, 0.60653067
  %v317 = vmul.f32 %v306, 0.60653067
  %v318 = vmul.f32 %v305, 0.60653067
  %v319 = vmul.f32 %v304, 0.60653067
  %v320 = vmul.f32 %v303, 0.60653067
  %v321 = vadd.f32 %v284, %v312
  %v322 = vadd.f32 %v285, %v313
  %v323 = vadd.f32 %v286, %v314
  %v324 = vadd.f32 %v287, %v315
  %v325 = vadd.f32 %v288, %v316
  %v326 = vadd.f32 %v289, %v317
  %v327 = vadd.f32 %v290, %v318
  %v328 = vadd.f32 %v291, %v319
  %v329 = vadd.f32 %v292, %v320
  %v330 = vrot.slane %v247, 1
  %v331 = vrot.slane %v248, 1
  %v332 = vrot.slane %v249, 1
  %v333 = vrot.slane %v250, 1
  %v334 = vrot.slane %v251, 1
  %v335 = vrot.slane %v252, 1
  %v336 = vrot.slane %v253, 1
  %v337 = vrot.slane %v254, 1
  %v338 = vrot.slane %v255, 1
  %vm339 = vcmp.lt.s32.totalorder %v92, 7
  %v340 = vsel %vm339, %v337, %v338
  %v341 = vsel %vm339, %v336, %v337
  %v342 = vsel %vm339, %v335, %v336
  %v343 = vsel %vm339, %v334, %v335
  %v344 = vsel %vm339, %v333, %v334
  %v345 = vsel %vm339, %v332, %v333
  %v346 = vsel %vm339, %v331, %v332
  %v347 = vsel %vm339, %v330, %v331
  %v348 = vsel %vm339, %v338, %v330
  %v349 = vmul.f32 %v347, 0.60653067
  %v350 = vmul.f32 %v346, 0.60653067
  %v351 = vmul.f32 %v345, 0.60653067
  %v352 = vmul.f32 %v344, 0.60653067
  %v353 = vmul.f32 %v343, 0.60653067
  %v354 = vmul.f32 %v342, 0.60653067
  %v355 = vmul.f32 %v341, 0.60653067
  %v356 = vmul.f32 %v340, 0.60653067
  %v357 = vmul.f32 %v348, 0.60653067
  %v358 = vadd.f32 %v321, %v349
  %v359 = vadd.f32 %v322, %v350
  %v360 = vadd.f32 %v323, %v351
  %v361 = vadd.f32 %v324, %v352
  %v362 = vadd.f32 %v325, %v353
  %v363 = vadd.f32 %v326, %v354
  %v364 = vadd.f32 %v327, %v355
  %v365 = vadd.f32 %v328, %v356
  %v366 = vadd.f32 %v329, %v357
  %v367 = vrot.slane %v247, 2
  %v368 = vrot.slane %v248, 2
  %v369 = vrot.slane %v249, 2
  %v370 = vrot.slane %v250, 2
  %v371 = vrot.slane %v251, 2
  %v372 = vrot.slane %v252, 2
  %v373 = vrot.slane %v253, 2
  %v374 = vrot.slane %v254, 2
  %v375 = vrot.slane %v255, 2
  %vm376 = vcmp.lt.s32.totalorder %v92, 6
  %v377 = vsel %vm376, %v374, %v375
  %v378 = vsel %vm376, %v373, %v374
  %v379 = vsel %vm376, %v372, %v373
  %v380 = vsel %vm376, %v371, %v372
  %v381 = vsel %vm376, %v370, %v371
  %v382 = vsel %vm376, %v369, %v370
  %v383 = vsel %vm376, %v368, %v369
  %v384 = vsel %vm376, %v367, %v368
  %v385 = vsel %vm376, %v375, %v367
  %v386 = vmul.f32 %v384, 0.13533528
  %v387 = vmul.f32 %v383, 0.13533528
  %v388 = vmul.f32 %v382, 0.13533528
  %v389 = vmul.f32 %v381, 0.13533528
  %v390 = vmul.f32 %v380, 0.13533528
  %v391 = vmul.f32 %v379, 0.13533528
  %v392 = vmul.f32 %v378, 0.13533528
  %v393 = vmul.f32 %v377, 0.13533528
  %v394 = vmul.f32 %v385, 0.13533528
  %v395 = vadd.f32 %v358, %v386
  %v396 = vadd.f32 %v359, %v387
  %v397 = vadd.f32 %v360, %v388
  %v398 = vadd.f32 %v361, %v389
  %v399 = vadd.f32 %v362, %v390
  %v400 = vadd.f32 %v363, %v391
  %v401 = vadd.f32 %v364, %v392
  %v402 = vadd.f32 %v365, %v393
  %v403 = vadd.f32 %v366, %v394
  %v404 = vsel %vm106, 1, 0
  %v405 = vsel %vm107, 1, 0
  %v406 = vsel %vm108, 1, 0
  %407 = vset.pattern.permute.xlu0 0
  %408 = vperm.xlu0 %407, %v404
  %v409 = vpop.permute.xlu0 %408
  %410 = vset.pattern.permute.xlu0 0
  %411 = vperm.xlu0 %410, %v405
  %v412 = vpop.permute.xlu0 %411
  %413 = vset.pattern.permute.xlu0 0
  %414 = vperm.xlu0 %413, %v406
  %v415 = vpop.permute.xlu0 %414
  %vm416 = vcmp.eq.s32.totalorder %v409, 1
  %vm417 = vcmp.eq.s32.totalorder %v412, 1
  %vm418 = vcmp.eq.s32.totalorder %v415, 1
  %v419 = vsel %vm111, 1, 0
  %vm420 = vcmp.eq.s32.totalorder %v419, 1
  %vm421 = vmand %vm416, %vm420
  %vm422 = vmand %vm417, %vm420
  %vm423 = vmand %vm418, %vm420
  %v424 = vsel %vm421, %v395, 0.0
  %v425 = vsel %vm422, %v396, 0.0
  %v426 = vsel %vm423, %v397, 0.0
  %v427 = vsel %vm421, %v398, 0.0
  %v428 = vsel %vm422, %v399, 0.0
  %v429 = vsel %vm423, %v400, 0.0
  %v430 = vsel %vm421, %v401, 0.0
  %v431 = vsel %vm422, %v402, 0.0
  %v432 = vsel %vm423, %v403, 0.0
  %433 = vst [vmem:[%s2 - $0x4] sm:$0xf0] %v424
  %434 = vst [vmem:[%s2 + $0x4] sm:$0xff] %v425
  %435 = vst [vmem:[%s2 + $0xc] sm:$0xf] %v426
  %s436 = scalar_lea.vmem %s2, 16
  %437 = vst [vmem:[%s436 - $0x4] sm:$0xf0] %v427
  %438 = vst [vmem:[%s436 + $0x4] sm:$0xff] %v428
  %439 = vst [vmem:[%s436 + $0xc] sm:$0xf] %v429
  %s440 = scalar_lea.vmem %s2, 32
  %441 = vst [vmem:[%s440 - $0x4] sm:$0xf0] %v430
  %442 = vst [vmem:[%s440 + $0x4] sm:$0xff] %v431
  %443 = vst [vmem:[%s440 + $0xc] sm:$0xf] %v432
  %444 = vrot.lane.b32.xlu0 %v424, 1
  %v445 = vpop.permute.xlu0 %444
  %446 = vrot.lane.b32.xlu0 %v425, 1
  %v447 = vpop.permute.xlu0 %446
  %448 = vrot.lane.b32.xlu0 %v426, 1
  %v449 = vpop.permute.xlu0 %448
  %450 = vrot.lane.b32.xlu0 %v427, 1
  %v451 = vpop.permute.xlu0 %450
  %452 = vrot.lane.b32.xlu0 %v428, 1
  %v453 = vpop.permute.xlu0 %452
  %454 = vrot.lane.b32.xlu0 %v429, 1
  %v455 = vpop.permute.xlu0 %454
  %456 = vrot.lane.b32.xlu0 %v430, 1
  %v457 = vpop.permute.xlu0 %456
  %458 = vrot.lane.b32.xlu0 %v431, 1
  %v459 = vpop.permute.xlu0 %458
  %460 = vrot.lane.b32.xlu0 %v432, 1
  %v461 = vpop.permute.xlu0 %460
  %462 = vrot.lane.b32.xlu0 %v424, 127
  %v463 = vpop.permute.xlu0 %462
  %464 = vrot.lane.b32.xlu0 %v425, 127
  %v465 = vpop.permute.xlu0 %464
  %466 = vrot.lane.b32.xlu0 %v426, 127
  %v467 = vpop.permute.xlu0 %466
  %468 = vrot.lane.b32.xlu0 %v427, 127
  %v469 = vpop.permute.xlu0 %468
  %470 = vrot.lane.b32.xlu0 %v428, 127
  %v471 = vpop.permute.xlu0 %470
  %472 = vrot.lane.b32.xlu0 %v429, 127
  %v473 = vpop.permute.xlu0 %472
  %474 = vrot.lane.b32.xlu0 %v430, 127
  %v475 = vpop.permute.xlu0 %474
  %476 = vrot.lane.b32.xlu0 %v431, 127
  %v477 = vpop.permute.xlu0 %476
  %478 = vrot.lane.b32.xlu0 %v432, 127
  %v479 = vpop.permute.xlu0 %478
  %v480 = vsub.f32 %v445, %v463
  %v481 = vsub.f32 %v447, %v465
  %v482 = vsub.f32 %v449, %v467
  %v483 = vsub.f32 %v451, %v469
  %v484 = vsub.f32 %v453, %v471
  %v485 = vsub.f32 %v455, %v473
  %v486 = vsub.f32 %v457, %v475
  %v487 = vsub.f32 %v459, %v477
  %v488 = vsub.f32 %v461, %v479
  %v489 = vrot.slane %v480, 7
  %v490 = vrot.slane %v481, 7
  %v491 = vrot.slane %v482, 7
  %v492 = vrot.slane %v483, 7
  %v493 = vrot.slane %v484, 7
  %v494 = vrot.slane %v485, 7
  %v495 = vrot.slane %v486, 7
  %v496 = vrot.slane %v487, 7
  %v497 = vrot.slane %v488, 7
  %v498 = vsel %vm302, %v496, %v497
  %v499 = vsel %vm302, %v495, %v496
  %v500 = vsel %vm302, %v494, %v495
  %v501 = vsel %vm302, %v493, %v494
  %v502 = vsel %vm302, %v492, %v493
  %v503 = vsel %vm302, %v491, %v492
  %v504 = vsel %vm302, %v490, %v491
  %v505 = vsel %vm302, %v489, %v490
  %v506 = vsel %vm302, %v497, %v489
  %v507 = vmul.f32 %v480, 2.0
  %v508 = vmul.f32 %v481, 2.0
  %v509 = vmul.f32 %v482, 2.0
  %v510 = vmul.f32 %v483, 2.0
  %v511 = vmul.f32 %v484, 2.0
  %v512 = vmul.f32 %v485, 2.0
  %v513 = vmul.f32 %v486, 2.0
  %v514 = vmul.f32 %v487, 2.0
  %v515 = vmul.f32 %v488, 2.0
  %v516 = vadd.f32 %v506, %v507
  %v517 = vadd.f32 %v505, %v508
  %v518 = vadd.f32 %v504, %v509
  %v519 = vadd.f32 %v503, %v510
  %v520 = vadd.f32 %v502, %v511
  %v521 = vadd.f32 %v501, %v512
  %v522 = vadd.f32 %v500, %v513
  %v523 = vadd.f32 %v499, %v514
  %v524 = vadd.f32 %v498, %v515
  %v525 = vrot.slane %v480, 1
  %v526 = vrot.slane %v481, 1
  %v527 = vrot.slane %v482, 1
  %v528 = vrot.slane %v483, 1
  %v529 = vrot.slane %v484, 1
  %v530 = vrot.slane %v485, 1
  %v531 = vrot.slane %v486, 1
  %v532 = vrot.slane %v487, 1
  %v533 = vrot.slane %v488, 1
  %v534 = vsel %vm339, %v532, %v533
  %v535 = vsel %vm339, %v531, %v532
  %v536 = vsel %vm339, %v530, %v531
  %v537 = vsel %vm339, %v529, %v530
  %v538 = vsel %vm339, %v528, %v529
  %v539 = vsel %vm339, %v527, %v528
  %v540 = vsel %vm339, %v526, %v527
  %v541 = vsel %vm339, %v525, %v526
  %v542 = vsel %vm339, %v533, %v525
  %v543 = vadd.f32 %v516, %v541
  %v544 = vadd.f32 %v517, %v540
  %v545 = vadd.f32 %v518, %v539
  %v546 = vadd.f32 %v519, %v538
  %v547 = vadd.f32 %v520, %v537
  %v548 = vadd.f32 %v521, %v536
  %v549 = vadd.f32 %v522, %v535
  %v550 = vadd.f32 %v523, %v534
  %v551 = vadd.f32 %v524, %v542
  %v552 = vrot.slane %v424, 7
  %v553 = vrot.slane %v425, 7
  %v554 = vrot.slane %v426, 7
  %v555 = vrot.slane %v427, 7
  %v556 = vrot.slane %v428, 7
  %v557 = vrot.slane %v429, 7
  %v558 = vrot.slane %v430, 7
  %v559 = vrot.slane %v431, 7
  %v560 = vrot.slane %v432, 7
  %v561 = vsel %vm302, %v559, %v560
  %v562 = vsel %vm302, %v558, %v559
  %v563 = vsel %vm302, %v557, %v558
  %v564 = vsel %vm302, %v556, %v557
  %v565 = vsel %vm302, %v555, %v556
  %v566 = vsel %vm302, %v554, %v555
  %v567 = vsel %vm302, %v553, %v554
  %v568 = vsel %vm302, %v552, %v553
  %v569 = vsel %vm302, %v560, %v552
  %v570 = vrot.slane %v424, 1
  %v571 = vrot.slane %v425, 1
  %v572 = vrot.slane %v426, 1
  %v573 = vrot.slane %v427, 1
  %v574 = vrot.slane %v428, 1
  %v575 = vrot.slane %v429, 1
  %v576 = vrot.slane %v430, 1
  %v577 = vrot.slane %v431, 1
  %v578 = vrot.slane %v432, 1
  %v579 = vsel %vm339, %v577, %v578
  %v580 = vsel %vm339, %v576, %v577
  %v581 = vsel %vm339, %v575, %v576
  %v582 = vsel %vm339, %v574, %v575
  %v583 = vsel %vm339, %v573, %v574
  %v584 = vsel %vm339, %v572, %v573
  %v585 = vsel %vm339, %v571, %v572
  %v586 = vsel %vm339, %v570, %v571
  %v587 = vsel %vm339, %v578, %v570
  %v588 = vsub.f32 %v569, %v586
  %v589 = vsub.f32 %v568, %v585
  %v590 = vsub.f32 %v567, %v584
  %v591 = vsub.f32 %v566, %v583
  %v592 = vsub.f32 %v565, %v582
  %v593 = vsub.f32 %v564, %v581
  %v594 = vsub.f32 %v563, %v580
  %v595 = vsub.f32 %v562, %v579
  %v596 = vsub.f32 %v561, %v587
  %597 = vrot.lane.b32.xlu0 %v588, 1
  %v598 = vpop.permute.xlu0 %597
  %599 = vrot.lane.b32.xlu0 %v589, 1
  %v600 = vpop.permute.xlu0 %599
  %601 = vrot.lane.b32.xlu0 %v590, 1
  %v602 = vpop.permute.xlu0 %601
  %603 = vrot.lane.b32.xlu0 %v591, 1
  %v604 = vpop.permute.xlu0 %603
  %605 = vrot.lane.b32.xlu0 %v592, 1
  %v606 = vpop.permute.xlu0 %605
  %607 = vrot.lane.b32.xlu0 %v593, 1
  %v608 = vpop.permute.xlu0 %607
  %609 = vrot.lane.b32.xlu0 %v594, 1
  %v610 = vpop.permute.xlu0 %609
  %611 = vrot.lane.b32.xlu0 %v595, 1
  %v612 = vpop.permute.xlu0 %611
  %613 = vrot.lane.b32.xlu0 %v596, 1
  %v614 = vpop.permute.xlu0 %613
  %v615 = vmul.f32 %v588, 2.0
  %v616 = vmul.f32 %v589, 2.0
  %v617 = vmul.f32 %v590, 2.0
  %v618 = vmul.f32 %v591, 2.0
  %v619 = vmul.f32 %v592, 2.0
  %v620 = vmul.f32 %v593, 2.0
  %v621 = vmul.f32 %v594, 2.0
  %v622 = vmul.f32 %v595, 2.0
  %v623 = vmul.f32 %v596, 2.0
  %v624 = vadd.f32 %v598, %v615
  %v625 = vadd.f32 %v600, %v616
  %v626 = vadd.f32 %v602, %v617
  %v627 = vadd.f32 %v604, %v618
  %v628 = vadd.f32 %v606, %v619
  %v629 = vadd.f32 %v608, %v620
  %v630 = vadd.f32 %v610, %v621
  %v631 = vadd.f32 %v612, %v622
  %v632 = vadd.f32 %v614, %v623
  %633 = vrot.lane.b32.xlu0 %v588, 127
  %v634 = vpop.permute.xlu0 %633
  %635 = vrot.lane.b32.xlu0 %v589, 127
  %v636 = vpop.permute.xlu0 %635
  %637 = vrot.lane.b32.xlu0 %v590, 127
  %v638 = vpop.permute.xlu0 %637
  %639 = vrot.lane.b32.xlu0 %v591, 127
  %v640 = vpop.permute.xlu0 %639
  %641 = vrot.lane.b32.xlu0 %v592, 127
  %v642 = vpop.permute.xlu0 %641
  %643 = vrot.lane.b32.xlu0 %v593, 127
  %v644 = vpop.permute.xlu0 %643
  %645 = vrot.lane.b32.xlu0 %v594, 127
  %v646 = vpop.permute.xlu0 %645
  %647 = vrot.lane.b32.xlu0 %v595, 127
  %v648 = vpop.permute.xlu0 %647
  %649 = vrot.lane.b32.xlu0 %v596, 127
  %v650 = vpop.permute.xlu0 %649
  %v651 = vadd.f32 %v624, %v634
  %v652 = vadd.f32 %v625, %v636
  %v653 = vadd.f32 %v626, %v638
  %v654 = vadd.f32 %v627, %v640
  %v655 = vadd.f32 %v628, %v642
  %v656 = vadd.f32 %v629, %v644
  %v657 = vadd.f32 %v630, %v646
  %v658 = vadd.f32 %v631, %v648
  %v659 = vadd.f32 %v632, %v650
  %v660 = vmul.f32 %v543, %v543
  %v661 = vmul.f32 %v544, %v544
  %v662 = vmul.f32 %v545, %v545
  %v663 = vmul.f32 %v546, %v546
  %v664 = vmul.f32 %v547, %v547
  %v665 = vmul.f32 %v548, %v548
  %v666 = vmul.f32 %v549, %v549
  %v667 = vmul.f32 %v550, %v550
  %v668 = vmul.f32 %v551, %v551
  %v669 = vmul.f32 %v651, %v651
  %v670 = vmul.f32 %v652, %v652
  %v671 = vmul.f32 %v653, %v653
  %v672 = vmul.f32 %v654, %v654
  %v673 = vmul.f32 %v655, %v655
  %v674 = vmul.f32 %v656, %v656
  %v675 = vmul.f32 %v657, %v657
  %v676 = vmul.f32 %v658, %v658
  %v677 = vmul.f32 %v659, %v659
  %v678 = vadd.f32 %v660, %v669
  %v679 = vadd.f32 %v661, %v670
  %v680 = vadd.f32 %v662, %v671
  %v681 = vadd.f32 %v663, %v672
  %v682 = vadd.f32 %v664, %v673
  %v683 = vadd.f32 %v665, %v674
  %v684 = vadd.f32 %v666, %v675
  %v685 = vadd.f32 %v667, %v676
  %v686 = vadd.f32 %v668, %v677
  %v687 = vrsqrt.pop %v678
  %v688 = vmul.f32 %v678, %v687
  %vm689 = vcmp.eq.f32.partialorder %v678, inf
  %v690 = vsel %vm689, %v678, %v688
  %vm691 = vcmp.eq.f32.partialorder %v678, 0.0
  %v692 = vand.u32 %v678, 2147483648
  %v693 = vsel %vm691, %v692, %v690
  %v694 = vrsqrt.pop %v679
  %v695 = vmul.f32 %v679, %v694
  %vm696 = vcmp.eq.f32.partialorder %v679, inf
  %v697 = vsel %vm696, %v679, %v695
  %vm698 = vcmp.eq.f32.partialorder %v679, 0.0
  %v699 = vand.u32 %v679, 2147483648
  %v700 = vsel %vm698, %v699, %v697
  %v701 = vrsqrt.pop %v680
  %v702 = vmul.f32 %v680, %v701
  %vm703 = vcmp.eq.f32.partialorder %v680, inf
  %v704 = vsel %vm703, %v680, %v702
  %vm705 = vcmp.eq.f32.partialorder %v680, 0.0
  %v706 = vand.u32 %v680, 2147483648
  %v707 = vsel %vm705, %v706, %v704
  %v708 = vrsqrt.pop %v681
  %v709 = vmul.f32 %v681, %v708
  %vm710 = vcmp.eq.f32.partialorder %v681, inf
  %v711 = vsel %vm710, %v681, %v709
  %vm712 = vcmp.eq.f32.partialorder %v681, 0.0
  %v713 = vand.u32 %v681, 2147483648
  %v714 = vsel %vm712, %v713, %v711
  %v715 = vrsqrt.pop %v682
  %v716 = vmul.f32 %v682, %v715
  %vm717 = vcmp.eq.f32.partialorder %v682, inf
  %v718 = vsel %vm717, %v682, %v716
  %vm719 = vcmp.eq.f32.partialorder %v682, 0.0
  %v720 = vand.u32 %v682, 2147483648
  %v721 = vsel %vm719, %v720, %v718
  %v722 = vrsqrt.pop %v683
  %v723 = vmul.f32 %v683, %v722
  %vm724 = vcmp.eq.f32.partialorder %v683, inf
  %v725 = vsel %vm724, %v683, %v723
  %vm726 = vcmp.eq.f32.partialorder %v683, 0.0
  %v727 = vand.u32 %v683, 2147483648
  %v728 = vsel %vm726, %v727, %v725
  %v729 = vrsqrt.pop %v684
  %v730 = vmul.f32 %v684, %v729
  %vm731 = vcmp.eq.f32.partialorder %v684, inf
  %v732 = vsel %vm731, %v684, %v730
  %vm733 = vcmp.eq.f32.partialorder %v684, 0.0
  %v734 = vand.u32 %v684, 2147483648
  %v735 = vsel %vm733, %v734, %v732
  %v736 = vrsqrt.pop %v685
  %v737 = vmul.f32 %v685, %v736
  %vm738 = vcmp.eq.f32.partialorder %v685, inf
  %v739 = vsel %vm738, %v685, %v737
  %vm740 = vcmp.eq.f32.partialorder %v685, 0.0
  %v741 = vand.u32 %v685, 2147483648
  %v742 = vsel %vm740, %v741, %v739
  %v743 = vrsqrt.pop %v686
  %v744 = vmul.f32 %v686, %v743
  %vm745 = vcmp.eq.f32.partialorder %v686, inf
  %v746 = vsel %vm745, %v686, %v744
  %vm747 = vcmp.eq.f32.partialorder %v686, 0.0
  %v748 = vand.u32 %v686, 2147483648
  %v749 = vsel %vm747, %v748, %v746
  %v750 = vadd.f32 %v693, %v714
  %v751 = vadd.f32 %v700, %v721
  %v752 = vadd.f32 %v707, %v728
  %v753 = vadd.f32 %v750, %v735
  %v754 = vadd.f32 %v751, %v742
  %v755 = vadd.f32 %v752, %v749
  %v756 = vadd.f32 %v543, %v546
  %v757 = vadd.f32 %v544, %v547
  %v758 = vadd.f32 %v545, %v548
  %v759 = vadd.f32 %v756, %v549
  %v760 = vadd.f32 %v757, %v550
  %v761 = vadd.f32 %v758, %v551
  %v762 = vadd.f32 %v651, %v654
  %v763 = vadd.f32 %v652, %v655
  %v764 = vadd.f32 %v653, %v656
  %v765 = vadd.f32 %v762, %v657
  %v766 = vadd.f32 %v763, %v658
  %v767 = vadd.f32 %v764, %v659
  %vm768 = vcmp.eq.s32.totalorder %v404, 1
  %vm769 = vcmp.eq.s32.totalorder %v405, 1
  %vm770 = vcmp.eq.s32.totalorder %v406, 1
  %vm771 = vmand %vm768, %vm420
  %vm772 = vmand %vm769, %vm420
  %vm773 = vmand %vm770, %vm420
  %v774 = vsel %vm771, %v753, 0.0
  %v775 = vsel %vm772, %v754, 0.0
  %v776 = vsel %vm773, %v755, 0.0
  %v777 = vand.u32 2147483647, %v759
  %v778 = vand.u32 2147483647, %v760
  %v779 = vand.u32 2147483647, %v761
  %v780 = vand.u32 2147483647, %v765
  %v781 = vand.u32 2147483647, %v766
  %v782 = vand.u32 2147483647, %v767
  %v783 = vmul.f32 %v777, 0.41421318
  %v784 = vmul.f32 %v778, 0.41421318
  %v785 = vmul.f32 %v779, 0.41421318
  %vm786 = vcmp.le.f32.partialorder %v780, %v783
  %vm787 = vcmp.le.f32.partialorder %v781, %v784
  %vm788 = vcmp.le.f32.partialorder %v782, %v785
  %v789 = vmul.f32 %v777, 2.4142067
  %v790 = vmul.f32 %v778, 2.4142067
  %v791 = vmul.f32 %v779, 2.4142067
  %vm792 = vcmp.ge.f32.partialorder %v780, %v789
  %vm793 = vcmp.ge.f32.partialorder %v781, %v790
  %vm794 = vcmp.ge.f32.partialorder %v782, %v791
  %vm795 = vcmp.ge.f32.partialorder %v759, 0.0
  %vm796 = vcmp.ge.f32.partialorder %v760, 0.0
  %vm797 = vcmp.ge.f32.partialorder %v761, 0.0
  %vm798 = vcmp.ge.f32.partialorder %v765, 0.0
  %vm799 = vcmp.ge.f32.partialorder %v766, 0.0
  %vm800 = vcmp.ge.f32.partialorder %v767, 0.0
  %v801 = vsel %vm798, 8, 0
  %v802 = vsel %vm799, 8, 0
  %v803 = vsel %vm800, 8, 0
  %v804 = vsel %vm795, 4, %v801
  %v805 = vsel %vm796, 4, %v802
  %v806 = vsel %vm797, 4, %v803
  %v807 = vsel %vm798, 6, 2
  %v808 = vsel %vm799, 6, 2
  %v809 = vsel %vm800, 6, 2
  %v810 = vsel %vm795, 5, 7
  %v811 = vsel %vm796, 5, 7
  %v812 = vsel %vm797, 5, 7
  %v813 = vsel %vm795, 3, 1
  %v814 = vsel %vm796, 3, 1
  %v815 = vsel %vm797, 3, 1
  %v816 = vsel %vm798, %v810, %v813
  %v817 = vsel %vm799, %v811, %v814
  %v818 = vsel %vm800, %v812, %v815
  %v819 = vsel %vm792, %v807, %v816
  %v820 = vsel %vm793, %v808, %v817
  %v821 = vsel %vm794, %v809, %v818
  %v822 = vsel %vm786, %v804, %v819
  %v823 = vsel %vm787, %v805, %v820
  %v824 = vsel %vm788, %v806, %v821
  %v825 = vcvt.s32.f32 %v822
  %v826 = vcvt.s32.f32 %v823
  %v827 = vcvt.s32.f32 %v824
  %v828 = vmul.f32 %v825, 45.0
  %v829 = vmul.f32 %v826, 45.0
  %v830 = vmul.f32 %v827, 45.0
  %v831 = vand.u32 %v822, 7
  %v832 = vand.u32 %v823, 7
  %v833 = vand.u32 %v824, 7
  %834 = vrot.lane.b32.xlu0 %v774, 127
  %v835 = vpop.permute.xlu0 %834
  %836 = vrot.lane.b32.xlu0 %v775, 127
  %v837 = vpop.permute.xlu0 %836
  %838 = vrot.lane.b32.xlu0 %v776, 127
  %v839 = vpop.permute.xlu0 %838
  %840 = vrot.lane.b32.xlu0 %v774, 1
  %v841 = vpop.permute.xlu0 %840
  %842 = vrot.lane.b32.xlu0 %v775, 1
  %v843 = vpop.permute.xlu0 %842
  %844 = vrot.lane.b32.xlu0 %v776, 1
  %v845 = vpop.permute.xlu0 %844
  %v846 = vrot.slane %v774, 1
  %v847 = vrot.slane %v775, 1
  %v848 = vrot.slane %v776, 1
  %v849 = vsel %vm339, %v847, %v848
  %v850 = vsel %vm339, %v846, %v847
  %v851 = vsel %vm339, %v848, %v846
  %v852 = vrot.slane %v774, 7
  %v853 = vrot.slane %v775, 7
  %v854 = vrot.slane %v776, 7
  %v855 = vsel %vm302, %v853, %v854
  %v856 = vsel %vm302, %v852, %v853
  %v857 = vsel %vm302, %v854, %v852
  %v858 = vrot.slane %v835, 1
  %v859 = vrot.slane %v837, 1
  %v860 = vrot.slane %v839, 1
  %v861 = vsel %vm339, %v859, %v860
  %v862 = vsel %vm339, %v858, %v859
  %v863 = vsel %vm339, %v860, %v858
  %v864 = vrot.slane %v835, 7
  %v865 = vrot.slane %v837, 7
  %v866 = vrot.slane %v839, 7
  %v867 = vsel %vm302, %v865, %v866
  %v868 = vsel %vm302, %v864, %v865
  %v869 = vsel %vm302, %v866, %v864
  %v870 = vrot.slane %v841, 1
  %v871 = vrot.slane %v843, 1
  %v872 = vrot.slane %v845, 1
  %v873 = vsel %vm339, %v871, %v872
  %v874 = vsel %vm339, %v870, %v871
  %v875 = vsel %vm339, %v872, %v870
  %v876 = vrot.slane %v841, 7
  %v877 = vrot.slane %v843, 7
  %v878 = vrot.slane %v845, 7
  %v879 = vsel %vm302, %v877, %v878
  %v880 = vsel %vm302, %v876, %v877
  %v881 = vsel %vm302, %v878, %v876
  %vm882 = vcmp.eq.s32.totalorder %v831, 0
  %vm883 = vcmp.eq.s32.totalorder %v832, 0
  %vm884 = vcmp.eq.s32.totalorder %v833, 0
  %v885 = vsub.f32 %v774, %v835
  %v886 = vsub.f32 %v775, %v837
  %v887 = vsub.f32 %v776, %v839
  %v888 = vsel %vm882, %v885, 0.0
  %v889 = vsel %vm883, %v886, 0.0
  %v890 = vsel %vm884, %v887, 0.0
  %v891 = vsub.f32 %v774, %v841
  %v892 = vsub.f32 %v775, %v843
  %v893 = vsub.f32 %v776, %v845
  %v894 = vsel %vm882, %v891, 0.0
  %v895 = vsel %vm883, %v892, 0.0
  %v896 = vsel %vm884, %v893, 0.0
  %vm897 = vcmp.eq.s32.totalorder %v831, 1
  %vm898 = vcmp.eq.s32.totalorder %v832, 1
  %vm899 = vcmp.eq.s32.totalorder %v833, 1
  %v900 = vsub.f32 %v774, %v862
  %v901 = vsub.f32 %v775, %v861
  %v902 = vsub.f32 %v776, %v863
  %v903 = vsel %vm897, %v900, %v888
  %v904 = vsel %vm898, %v901, %v889
  %v905 = vsel %vm899, %v902, %v890
  %v906 = vsub.f32 %v774, %v881
  %v907 = vsub.f32 %v775, %v880
  %v908 = vsub.f32 %v776, %v879
  %v909 = vsel %vm897, %v906, %v894
  %v910 = vsel %vm898, %v907, %v895
  %v911 = vsel %vm899, %v908, %v896
  %vm912 = vcmp.eq.s32.totalorder %v831, 2
  %vm913 = vcmp.eq.s32.totalorder %v832, 2
  %vm914 = vcmp.eq.s32.totalorder %v833, 2
  %v915 = vsub.f32 %v774, %v850
  %v916 = vsub.f32 %v775, %v849
  %v917 = vsub.f32 %v776, %v851
  %v918 = vsel %vm912, %v915, %v903
  %v919 = vsel %vm913, %v916, %v904
  %v920 = vsel %vm914, %v917, %v905
  %v921 = vsub.f32 %v774, %v857
  %v922 = vsub.f32 %v775, %v856
  %v923 = vsub.f32 %v776, %v855
  %v924 = vsel %vm912, %v921, %v909
  %v925 = vsel %vm913, %v922, %v910
  %v926 = vsel %vm914, %v923, %v911
  %vm927 = vcmp.eq.s32.totalorder %v831, 3
  %vm928 = vcmp.eq.s32.totalorder %v832, 3
  %vm929 = vcmp.eq.s32.totalorder %v833, 3
  %v930 = vsub.f32 %v774, %v874
  %v931 = vsub.f32 %v775, %v873
  %v932 = vsub.f32 %v776, %v875
  %v933 = vsel %vm927, %v930, %v918
  %v934 = vsel %vm928, %v931, %v919
  %v935 = vsel %vm929, %v932, %v920
  %v936 = vsub.f32 %v774, %v869
  %v937 = vsub.f32 %v775, %v868
  %v938 = vsub.f32 %v776, %v867
  %v939 = vsel %vm927, %v936, %v924
  %v940 = vsel %vm928, %v937, %v925
  %v941 = vsel %vm929, %v938, %v926
  %vm942 = vcmp.eq.s32.totalorder %v831, 4
  %vm943 = vcmp.eq.s32.totalorder %v832, 4
  %vm944 = vcmp.eq.s32.totalorder %v833, 4
  %v945 = vsel %vm942, %v891, %v933
  %v946 = vsel %vm943, %v892, %v934
  %v947 = vsel %vm944, %v893, %v935
  %v948 = vsel %vm942, %v885, %v939
  %v949 = vsel %vm943, %v886, %v940
  %v950 = vsel %vm944, %v887, %v941
  %vm951 = vcmp.eq.s32.totalorder %v831, 5
  %vm952 = vcmp.eq.s32.totalorder %v832, 5
  %vm953 = vcmp.eq.s32.totalorder %v833, 5
  %v954 = vsel %vm951, %v906, %v945
  %v955 = vsel %vm952, %v907, %v946
  %v956 = vsel %vm953, %v908, %v947
  %v957 = vsel %vm951, %v900, %v948
  %v958 = vsel %vm952, %v901, %v949
  %v959 = vsel %vm953, %v902, %v950
  %vm960 = vcmp.eq.s32.totalorder %v831, 6
  %vm961 = vcmp.eq.s32.totalorder %v832, 6
  %vm962 = vcmp.eq.s32.totalorder %v833, 6
  %v963 = vsel %vm960, %v921, %v954
  %v964 = vsel %vm961, %v922, %v955
  %v965 = vsel %vm962, %v923, %v956
  %v966 = vsel %vm960, %v915, %v957
  %v967 = vsel %vm961, %v916, %v958
  %v968 = vsel %vm962, %v917, %v959
  %vm969 = vcmp.eq.s32.totalorder %v831, 7
  %vm970 = vcmp.eq.s32.totalorder %v832, 7
  %vm971 = vcmp.eq.s32.totalorder %v833, 7
  %v972 = vsel %vm969, %v936, %v963
  %v973 = vsel %vm970, %v937, %v964
  %v974 = vsel %vm971, %v938, %v965
  %v975 = vsel %vm969, %v930, %v966
  %v976 = vsel %vm970, %v931, %v967
  %v977 = vsel %vm971, %v932, %v968
  %v978 = vmin.f32 %v972, %v975
  %v979 = vmin.f32 %v973, %v976
  %v980 = vmin.f32 %v974, %v977
  %vm981 = vcmp.gt.f32.partialorder %v978, 0.0
  %vm982 = vcmp.gt.f32.partialorder %v979, 0.0
  %vm983 = vcmp.gt.f32.partialorder %v980, 0.0
  %v984 = vsel %vm981, %v774, 0.0
  %v985 = vsel %vm982, %v775, 0.0
  %v986 = vsel %vm983, %v776, 0.0
  %987 = vst [vmem:[%s3 - $0x4] sm:$0xf0] %v774
  %988 = vst [vmem:[%s3 + $0x4] sm:$0xff] %v775
  %989 = vst [vmem:[%s3 + $0xc] sm:$0xf] %v776
  %990 = vst [vmem:[%s4 - $0x4] sm:$0xf0] %v828
  %991 = vst [vmem:[%s4 + $0x4] sm:$0xff] %v829
  %992 = vst [vmem:[%s4 + $0xc] sm:$0xf] %v830
  %993 = vst [vmem:[%s5 - $0x4] sm:$0xf0] %v984
  %994 = vst [vmem:[%s5 + $0x4] sm:$0xff] %v985
  %995 = vst [vmem:[%s5 + $0xc] sm:$0xf] %v986
  %v996 = vstv %s16
  %vm997 = vcmp.lt.f32.partialorder %v984, %v996
  %vm998 = vcmp.lt.f32.partialorder %v985, %v996
  %vm999 = vcmp.lt.f32.partialorder %v986, %v996
  %v1000 = vsel %vm997, 0.0, %v984
  %v1001 = vsel %vm998, 0.0, %v985
  %v1002 = vsel %vm999, 0.0, %v986
  %1003 = vst [vmem:[%s6 - $0x4] sm:$0xf0] %v1000
  %1004 = vst [vmem:[%s6 + $0x4] sm:$0xff] %v1001
  %1005 = vst [vmem:[%s6 + $0xc] sm:$0xf] %v1002
  %vm1006 = vcmp.lt.f32.partialorder %v774, %v996
  %vm1007 = vcmp.lt.f32.partialorder %v775, %v996
  %vm1008 = vcmp.lt.f32.partialorder %v776, %v996
  %v1009 = vsel %vm1006, 0.0, %v774
  %v1010 = vsel %vm1007, 0.0, %v775
  %v1011 = vsel %vm1008, 0.0, %v776
  %1012 = vst [vmem:[%s7 - $0x4] sm:$0xf0] %v1009
  %1013 = vst [vmem:[%s7 + $0x4] sm:$0xff] %v1010
  %1014 = vst [vmem:[%s7 + $0xc] sm:$0xf] %v1011
  // Predicated region
  $region40: #{canny_net_forward.1} parent=0 // pred_check
    _
  $region41: #{canny_net_forward.1} parent=0 // pred_check_branch
    %1016 = sbr.rel (0) target = $region43
  $region42: #{canny_net_forward.1} parent=0 // pred_region
    _
  $region43: #{canny_net_forward.1} parent=0 // pred_fallthru
    _
  // Predicated region
  $region44: #{canny_net_forward.1} parent=0 // pred_check
    _
  $region45: #{canny_net_forward.1} parent=0 // pred_check_branch
    %1018 = sbr.rel (0) target = $region47
  $region46: #{canny_net_forward.1} parent=0 // pred_region
    _
  $region47: #{canny_net_forward.1} parent=0 // pred_fallthru
    _
  // Predicated region
  $region48: #{canny_net_forward.1} parent=0 // pred_check
    _
  $region49: #{canny_net_forward.1} parent=0 // pred_check_branch
    %1020 = sbr.rel (0) target = $region51
  $region50: #{canny_net_forward.1} parent=0 // pred_region
    _
  $region51: #{canny_net_forward.1} parent=0 // pred_fallthru
    _
  // Predicated region
  $region52: #{canny_net_forward.1} parent=0 // pred_check
    _
  $region53: #{canny_net_forward.1} parent=0 // pred_check_branch
    %1022 = sbr.rel (0) target = $region55
  $region54: #{canny_net_forward.1} parent=0 // pred_region
    _
  $region55: #{canny_net_forward.1} parent=0 // pred_fallthru
    _
  // Predicated region
  $region56: #{canny_net_forward.1} parent=0 // pred_check
    _
  $region57: #{canny_net_forward.1} parent=0 // pred_check_branch
    %1024 = sbr.rel (0) target = $region59
  $region58: #{canny_net_forward.1} parent=0 // pred_region
    _
  $region59: #{canny_net_forward.1} parent=0 // pred_fallthru
    _
  // Predicated region
  $region60: #{canny_net_forward.1} parent=0 // pred_check
    _
  $region61: #{canny_net_forward.1} parent=0 // pred_check_branch
    %1026 = sbr.rel (0) target = $region63
  $region62: #{canny_net_forward.1} parent=0 // pred_region
    _
  $region63: #{canny_net_forward.1} parent=0 // pred_fallthru
    _
  // Predicated region
  $region64: #{canny_net_forward.1} parent=0 // pred_check
    _
  $region65: #{canny_net_forward.1} parent=0 // pred_check_branch
    %1028 = sbr.rel (0) target = $region67
  $region66: #{canny_net_forward.1} parent=0 // pred_region
    _
  $region67: #{canny_net_forward.1} parent=0 // pred_fallthru
    _
  // Predicated region
  $region68: #{canny_net_forward.1} parent=0 // pred_check
    _
  $region69: #{canny_net_forward.1} parent=0 // pred_check_branch
    %1030 = sbr.rel (0) target = $region71
  $region70: #{canny_net_forward.1} parent=0 // pred_region
    _
  $region71: #{canny_net_forward.1} parent=0 // pred_fallthru
    _
  // Predicated region
  $region72: #{canny_net_forward.1} parent=0 // pred_check
    _
  $region73: #{canny_net_forward.1} parent=0 // pred_check_branch
    %1032 = sbr.rel (0) target = $region75
  $region74: #{canny_net_forward.1} parent=0 // pred_region
    _
  $region75: #{canny_net_forward.1} parent=0 // pred_fallthru
    _
  // Predicated region
  $region76: #{canny_net_forward.1} parent=0 // pred_check
    _
  $region77: #{canny_net_forward.1} parent=0 // pred_check_branch
    %1034 = sbr.rel (0) target = $region79
  $region78: #{canny_net_forward.1} parent=0 // pred_region
    _
  $region79: #{canny_net_forward.1} parent=0 // pred_fallthru
    _
  // Predicated region
  $region80: #{canny_net_forward.1} parent=0 // pred_check
    _
  $region81: #{canny_net_forward.1} parent=0 // pred_check_branch
    %1036 = sbr.rel (0) target = $region83
  $region82: #{canny_net_forward.1} parent=0 // pred_region
    _
  $region83: #{canny_net_forward.1} parent=0 // pred_fallthru
    _
  // Predicated region
  $region84: #{canny_net_forward.1} parent=0 // pred_check
    _
  $region85: #{canny_net_forward.1} parent=0 // pred_check_branch
    %1038 = sbr.rel (0) target = $region87
  $region86: #{canny_net_forward.1} parent=0 // pred_region
    _
  $region87: #{canny_net_forward.1} parent=0 // pred_fallthru
    _
  %1039 = vsyncmov [#allocation3]
  %s1040 = vpop.sfrf %1039
  %p1041 = scmp.eq.s32.totalorder %s1040, 0
  %p1042 = pneg %p1041
  %1044 = shalt.err (%p1042)

</llo_original>
